<compile_context>
chip_gen: v7x
topology: tpu7x:2x2x1
jax: 0.10.0
libtpu: 0.0.40
codegen_flags: <defaults>
</compile_context>

<pallas_src>
import functools

import jax
import jax.numpy as jnp
from jax.experimental import pallas as pl
from jax.experimental.pallas import tpu as pltpu


# ----------------------------------------------------------------------------
# Fused kernel: conv(im2col matmul) + ReLU + pool + mean + LSTM + FC
# ----------------------------------------------------------------------------
def fused_cnn_lstm_kernel(r_ref, ww_ref, ecol_ref, frow_ref, mavg_ref,
                          wih_ref, whh_ref, ball_ref, wfc_ref, bfc_ref,
                          out_ref, *, Bp, T, Hd, WC2, BH2):
    f32 = jnp.float32

    # ---- Conv2d(1->C, 3x3, pad=1) + bias + ReLU: one MXU matmul -------------
    # r_ref : (Bp*H, Kp)   padded-image rows (3 vertical taps) + ones col (+ zero pad)
    # ww_ref: (Kp, W*C)    banded conv-weight slab, row 3*(W+2) = bias, rest zero pad
    a = jnp.maximum(
        jnp.dot(r_ref[...], ww_ref[...], preferred_element_type=f32), 0.0)
    # a: (Bp*H, W*C), column index = w*C + c

    # ---- MaxPool(2,2), batched over every (b, c) feature map ----------------
    # width pairs: ONE wider dot, then VPU max of the two lane halves
    mc2 = jnp.dot(a, ecol_ref[...], preferred_element_type=f32)   # (Bp*H, 2*W2*C)
    mcol = jnp.maximum(mc2[:, :WC2], mc2[:, WC2:])                # (Bp*H, W2*C)
    # height pairs: ONE stacked dot, then VPU max of the two sublane halves
    mr2 = jnp.dot(frow_ref[...], mcol, preferred_element_type=f32)  # (2*Bp*H2, W2*C)
    mrow = jnp.maximum(mr2[:BH2, :], mr2[BH2:, :])                  # (Bp*H2, W2*C)

    # ---- mean over pooled-H (PyTorch .mean(dim=2)), still batched over b ----
    feat = jnp.dot(mavg_ref[...], mrow, preferred_element_type=f32)
    # feat: (Bp, T*C) with column t*C + c   (t = pooled-width index = timestep)

    # ---- LSTM: whole-sequence input projection via block-diagonal weight ----
    # wih_ref = kron(I_T, W_ih^T): (T*C, T*4H); ball_ref = tile(b_ih+b_hh, T)
    zx_all = (jnp.dot(feat, wih_ref[...], preferred_element_type=f32)
              + ball_ref[...])                                   # (Bp, T*4*Hd)
    whh = whh_ref[...]                                           # (Hd, 4*Hd)

    def sigmoid(v):                      # divide -> EUP approx reciprocal
        return pl.reciprocal(1.0 + jnp.exp(-v), approx=True)

    h = jnp.zeros((Bp, Hd), f32)
    c = jnp.zeros((Bp, Hd), f32)
    for t in range(T):                   # short static unroll (T = W/2)
        # lane-aligned 128-wide slice (4*Hd = 128): no sublane extracts
        z = zx_all[:, t * 4 * Hd:(t + 1) * 4 * Hd] + jnp.dot(
            h, whh, preferred_element_type=f32)
        i_g = sigmoid(z[:, 0 * Hd:1 * Hd])
        f_g = sigmoid(z[:, 1 * Hd:2 * Hd])
        g_g = jnp.tanh(z[:, 2 * Hd:3 * Hd])
        o_g = sigmoid(z[:, 3 * Hd:4 * Hd])
        c = f_g * c + i_g * g_g
        h = o_g * jnp.tanh(c)

    # ---- FC head: single lane-dense (Bp, 128) store --------------------------
    out_ref[...] = (jnp.dot(h, wfc_ref[...], preferred_element_type=f32)
                    + bfc_ref[...])


# ----------------------------------------------------------------------------
# Wrapper-side layout plumbing (weight/selection-matrix packing, padding)
# ----------------------------------------------------------------------------
def _conv_weight_slab(w_conv, b_conv, W, Kp):
    """(C,1,3,3) conv weights -> banded slab (Kp, W*C); row 3*(W+2) = bias."""
    C = w_conv.shape[0]
    Wp = W + 2
    K = 3 * Wp + 1
    ki, kj, wv = jnp.meshgrid(jnp.arange(3), jnp.arange(3), jnp.arange(W),
                              indexing="ij")
    rows = (ki * Wp + wv + kj).reshape(-1)                    # (9*W,)
    cols = wv.reshape(-1)                                     # (9*W,)
    vals = w_conv[:, 0, ki.reshape(-1), kj.reshape(-1)].T     # (9*W, C)
    slab = jnp.zeros((3 * Wp, W, C), jnp.float32).at[rows, cols, :].set(
        vals.astype(jnp.float32))
    slab = slab.reshape(3 * Wp, W * C)
    bias_row = jnp.tile(b_conv.astype(jnp.float32), (W,))[None, :]   # [w*C+c]=b[c]
    slab = jnp.concatenate([slab, bias_row], axis=0)          # (K, W*C)
    return jnp.pad(slab, ((0, Kp - K), (0, 0)))               # K -> Kp zero rows


def _pool_matrices(Bp, C, H, W):
    """Selection matmuls for batched 2x2 max-pool + mean over pooled-H.

    Width-pool selectors are concatenated along lanes, height-pool selectors
    along sublanes, so the kernel uses ONE dot + one VPU max per stage.
    """
    H2, W2 = H // 2, W // 2
    eyeC = jnp.eye(C, dtype=jnp.float32)
    eyeB = jnp.eye(Bp, dtype=jnp.float32)
    iw = jnp.arange(W2)
    e0w = jnp.zeros((W, W2), jnp.float32).at[2 * iw, iw].set(1.0)
    e1w = jnp.zeros((W, W2), jnp.float32).at[2 * iw + 1, iw].set(1.0)
    ih = jnp.arange(H2)
    f0h = jnp.zeros((H2, H), jnp.float32).at[ih, 2 * ih].set(1.0)
    f1h = jnp.zeros((H2, H), jnp.float32).at[ih, 2 * ih + 1].set(1.0)
    Ecol = jnp.concatenate([jnp.kron(e0w, eyeC), jnp.kron(e1w, eyeC)],
                           axis=1)                            # (W*C, 2*W2*C)
    Frow = jnp.concatenate([jnp.kron(eyeB, f0h), jnp.kron(eyeB, f1h)],
                           axis=0)                            # (2*Bp*H2, Bp*H)
    Mavg = jnp.kron(eyeB, jnp.full((1, H2), 1.0 / H2, jnp.float32))  # (Bp, Bp*H2)
    return Ecol, Frow, Mavg


@jax.jit
def cnn_lstm_forward(x, params):
    """x: (B, 1, H, W) float32 -> (B, num_classes)."""
    (w_conv, b_conv, w_ih, w_hh, b_ih, b_hh, w_fc, b_fc) = params
    B, _, H, W = x.shape
    C = w_conv.shape[0]
    Hd = w_hh.shape[1]
    ncls = w_fc.shape[0]
    T = W // 2
    Wp = W + 2
    K = 3 * Wp + 1

    # hardware-tile padding (all free: zero rows/cols, sliced off after the call)
    Bp = max(8, ((B + 7) // 8) * 8)           # batch -> full sublane tile
    Kp = ((K + 63) // 64) * 64                # im2col contraction 55 -> 64
    NCp = max(128, ((ncls + 127) // 128) * 128)  # logits -> lane-dense store

    # padded image rows for the 3 vertical conv taps + ones column (bias) + K pad
    xpad = jnp.pad(x[:, 0].astype(jnp.float32),
                   ((0, Bp - B), (1, 1), (1, 1)))             # (Bp, H+2, W+2)
    R = jnp.concatenate([xpad[:, ki:ki + H, :] for ki in range(3)], axis=-1)
    R = R.reshape(Bp * H, 3 * Wp)
    R_aug = jnp.concatenate(
        [R, jnp.ones((Bp * H, 1), jnp.float32),
         jnp.zeros((Bp * H, Kp - K), jnp.float32)], axis=1)   # (Bp*H, Kp)

    WW_aug = _conv_weight_slab(w_conv, b_conv, W, Kp)         # (Kp, W*C)
    Ecol, Frow, Mavg = _pool_matrices(Bp, C, H, W)

    # block-diagonal whole-sequence input projection: feat (Bp, T*C) @ (T*C, T*4Hd)
    wih_k = jnp.transpose(w_ih).astype(jnp.float32)           # (C, 4*Hd) (i,f,g,o)
    wih_blk = jnp.kron(jnp.eye(T, dtype=jnp.float32), wih_k)  # (T*C, T*4*Hd)
    whh_k = jnp.transpose(w_hh).astype(jnp.float32)           # (Hd, 4*Hd)
    b_all = jnp.tile((b_ih + b_hh).astype(jnp.float32)[None, :], (1, T))
    wfc_k = jnp.zeros((Hd, NCp), jnp.float32).at[:, :ncls].set(
        jnp.transpose(w_fc).astype(jnp.float32))              # (Hd, NCp)
    bfc_k = jnp.zeros((1, NCp), jnp.float32).at[:, :ncls].set(
        b_fc.astype(jnp.float32))

    operands = (R_aug, WW_aug, Ecol, Frow, Mavg,
                wih_blk, whh_k, b_all, wfc_k, bfc_k)
    kern = functools.partial(fused_cnn_lstm_kernel, Bp=Bp, T=T, Hd=Hd,
                             WC2=(W // 2) * C, BH2=Bp * (H // 2))

    # NOTE (scaling / v7x): at these toy shapes one grid step is optimal and the
    # whole working set is a few hundred KiB of VMEM.  For real inference batch
    # many sequences (B >= 128/256), switch to grid=(B // tb,) with a "parallel"
    # batch axis (2 TCs/chip on v7x) and size per-step blocks against v7x's
    # 64 MiB VMEM (raise vmem_limit_bytes if the im2col R block grows).
    out_p = pl.pallas_call(
        kern,
        out_shape=jax.ShapeDtypeStruct((Bp, NCp), jnp.float32),
        grid=(1,),
        in_specs=[pl.BlockSpec(op.shape, lambda i: (0, 0)) for op in operands],
        out_specs=pl.BlockSpec((Bp, NCp), lambda i: (0, 0)),
        compiler_params=pltpu.CompilerParams(
            dimension_semantics=("arbitrary",)),
    )(*operands)

    return out_p[:B, :ncls]


# ----------------------------------------------------------------------------
# Pure-JAX reference (same math, no Pallas) for a correctness check
# ----------------------------------------------------------------------------
def reference_forward(x, params):
    (w_conv, b_conv, w_ih, w_hh, b_ih, b_hh, w_fc, b_fc) = params
    B, _, H, W = x.shape
    C = w_conv.shape[0]
    xp = jnp.pad(x[:, 0], ((0, 0), (1, 1), (1, 1)))
    conv = jnp.broadcast_to(b_conv[None, :, None, None], (B, C, H, W))
    for ki in range(3):
        for kj in range(3):
            conv = conv + (xp[:, None, ki:ki + H, kj:kj + W] *
                           w_conv[:, 0, ki, kj][None, :, None, None])
    a = jnp.maximum(conv, 0.0)
    pooled = a.reshape(B, C, H // 2, 2, W // 2, 2).max(axis=(3, 5))
    feat = pooled.mean(axis=2)                         # (B, C, W/2)
    seq = jnp.transpose(feat, (0, 2, 1))               # (B, T, C)
    Hd = w_hh.shape[1]
    h = jnp.zeros((B, Hd), jnp.float32)
    c = jnp.zeros((B, Hd), jnp.float32)
    for t in range(seq.shape[1]):
        z = seq[:, t] @ w_ih.T + b_ih + h @ w_hh.T + b_hh
        i = jax.nn.sigmoid(z[:, :Hd])
        f = jax.nn.sigmoid(z[:, Hd:2 * Hd])
        g = jnp.tanh(z[:, 2 * Hd:3 * Hd])
        o = jax.nn.sigmoid(z[:, 3 * Hd:])
        c = f * c + i * g
        h = o * jnp.tanh(c)
    return h @ w_fc.T + b_fc


if __name__ == "__main__":
    # small shapes implied by the module's forward
    B, H, W = 2, 16, 16
    C = 4          # cnn_out_channels
    Hd = 32        # lstm_hidden_size
    NCLS = 8       # num_classes

    key = jax.random.PRNGKey(0)
    ks = jax.random.split(key, 9)
    params = (
        0.2 * jax.random.normal(ks[0], (C, 1, 3, 3), jnp.float32),   # conv weight
        0.2 * jax.random.normal(ks[1], (C,), jnp.float32),           # conv bias
        0.2 * jax.random.normal(ks[2], (4 * Hd, C), jnp.float32),    # lstm weight_ih
        0.2 * jax.random.normal(ks[3], (4 * Hd, Hd), jnp.float32),   # lstm weight_hh
        0.2 * jax.random.normal(ks[4], (4 * Hd,), jnp.float32),      # lstm bias_ih
        0.2 * jax.random.normal(ks[5], (4 * Hd,), jnp.float32),      # lstm bias_hh
        0.2 * jax.random.normal(ks[6], (NCLS, Hd), jnp.float32),     # fc weight
        0.2 * jax.random.normal(ks[7], (NCLS,), jnp.float32),        # fc bias
    )
    x = jax.random.normal(ks[8], (B, 1, H, W), jnp.float32)

    out = jax.block_until_ready(cnn_lstm_forward(x, params))
    ref = jax.block_until_ready(reference_forward(x, params))

    assert out.shape == (B, NCLS)
    assert jnp.allclose(out, ref, rtol=2e-2, atol=2e-2), (
        f"mismatch: max abs diff {float(jnp.max(jnp.abs(out - ref)))}")

    print("KERNEL_OK")
</pallas_src>

<mosaic_0001>
module attributes {stable_mosaic.version = 11 : i64} {
  func.func @fused_cnn_lstm_kernel(%arg0: i32, %arg1: memref<128x64xf32, #tpu.memory_space<vmem>>, %arg2: memref<64x64xf32, #tpu.memory_space<vmem>>, %arg3: memref<64x64xf32, #tpu.memory_space<vmem>>, %arg4: memref<128x128xf32, #tpu.memory_space<vmem>>, %arg5: memref<8x64xf32, #tpu.memory_space<vmem>>, %arg6: memref<32x1024xf32, #tpu.memory_space<vmem>>, %arg7: memref<32x128xf32, #tpu.memory_space<vmem>>, %arg8: memref<1x1024xf32, #tpu.memory_space<vmem>>, %arg9: memref<32x128xf32, #tpu.memory_space<vmem>>, %arg10: memref<1x128xf32, #tpu.memory_space<vmem>>, %arg11: memref<8x128xf32, #tpu.memory_space<vmem>>) attributes {dimension_semantics = [#tpu.dimension_semantics<arbitrary>], iteration_bounds = array<i64: 1>, scalar_prefetch = 0 : i64, scratch_operands = 0 : i64, tpu.core_type = #tpu.core_type<tc>, window_params = [{pipeline_mode = #tpu.pipeline_mode<synchronous>, transform_indices = @transform_0, window_bounds = array<i64: 128, 64>}, {pipeline_mode = #tpu.pipeline_mode<synchronous>, transform_indices = @transform_1, window_bounds = array<i64: 64, 64>}, {pipeline_mode = #tpu.pipeline_mode<synchronous>, transform_indices = @transform_2, window_bounds = array<i64: 64, 64>}, {pipeline_mode = #tpu.pipeline_mode<synchronous>, transform_indices = @transform_3, window_bounds = array<i64: 128, 128>}, {pipeline_mode = #tpu.pipeline_mode<synchronous>, transform_indices = @transform_4, window_bounds = array<i64: 8, 64>}, {pipeline_mode = #tpu.pipeline_mode<synchronous>, transform_indices = @transform_5, window_bounds = array<i64: 32, 1024>}, {pipeline_mode = #tpu.pipeline_mode<synchronous>, transform_indices = @transform_6, window_bounds = array<i64: 32, 128>}, {pipeline_mode = #tpu.pipeline_mode<synchronous>, transform_indices = @transform_7, window_bounds = array<i64: 1, 1024>}, {pipeline_mode = #tpu.pipeline_mode<synchronous>, transform_indices = @transform_8, window_bounds = array<i64: 32, 128>}, {pipeline_mode = #tpu.pipeline_mode<synchronous>, transform_indices = @transform_9, window_bounds = array<i64: 1, 128>}, {pipeline_mode = #tpu.pipeline_mode<synchronous>, transform_indices = @transform_10, window_bounds = array<i64: 8, 128>}]} {
    %c0 = arith.constant 0 : index
    %c0_0 = arith.constant 0 : index
    %0 = vector.load %arg1[%c0, %c0_0] : memref<128x64xf32, #tpu.memory_space<vmem>>, vector<128x64xf32>
    %c0_1 = arith.constant 0 : index
    %c0_2 = arith.constant 0 : index
    %1 = vector.load %arg2[%c0_1, %c0_2] : memref<64x64xf32, #tpu.memory_space<vmem>>, vector<64x64xf32>
    %cst = arith.constant dense<0.000000e+00> : vector<128x64xf32>
    %2 = tpu.matmul %0, %1, %cst {dimension_numbers = #tpu.dot_dimension_numbers<[1], [0], [0], [1], [0, 0, 1, 1], [], []>} : vector<128x64xf32>, vector<64x64xf32>, vector<128x64xf32> -> vector<128x64xf32>
    %cst_3 = arith.constant 0.000000e+00 : f32
    %3 = vector.broadcast %cst_3 : f32 to vector<128x64xf32>
    %4 = arith.maximumf %2, %3 : vector<128x64xf32>
    %c0_4 = arith.constant 0 : index
    %c0_5 = arith.constant 0 : index
    %5 = vector.load %arg3[%c0_4, %c0_5] : memref<64x64xf32, #tpu.memory_space<vmem>>, vector<64x64xf32>
    %cst_6 = arith.constant dense<0.000000e+00> : vector<128x64xf32>
    %6 = tpu.matmul %4, %5, %cst_6 {dimension_numbers = #tpu.dot_dimension_numbers<[1], [0], [0], [1], [0, 0, 1, 1], [], []>} : vector<128x64xf32>, vector<64x64xf32>, vector<128x64xf32> -> vector<128x64xf32>
    %7 = vector.extract_strided_slice %6 {offsets = [0, 0], sizes = [128, 32], strides = [1, 1]} : vector<128x64xf32> to vector<128x32xf32>
    %8 = vector.extract_strided_slice %6 {offsets = [0, 32], sizes = [128, 32], strides = [1, 1]} : vector<128x64xf32> to vector<128x32xf32>
    %9 = arith.maximumf %7, %8 : vector<128x32xf32>
    %c0_7 = arith.constant 0 : index
    %c0_8 = arith.constant 0 : index
    %10 = vector.load %arg4[%c0_7, %c0_8] : memref<128x128xf32, #tpu.memory_space<vmem>>, vector<128x128xf32>
    %cst_9 = arith.constant dense<0.000000e+00> : vector<128x32xf32>
    %11 = tpu.matmul %10, %9, %cst_9 {dimension_numbers = #tpu.dot_dimension_numbers<[1], [0], [0], [1], [0, 0, 1, 1], [], []>} : vector<128x128xf32>, vector<128x32xf32>, vector<128x32xf32> -> vector<128x32xf32>
    %12 = vector.extract_strided_slice %11 {offsets = [0, 0], sizes = [64, 32], strides = [1, 1]} : vector<128x32xf32> to vector<64x32xf32>
    %13 = vector.extract_strided_slice %11 {offsets = [64, 0], sizes = [64, 32], strides = [1, 1]} : vector<128x32xf32> to vector<64x32xf32>
    %14 = arith.maximumf %12, %13 : vector<64x32xf32>
    %c0_10 = arith.constant 0 : index
    %c0_11 = arith.constant 0 : index
    %15 = vector.load %arg5[%c0_10, %c0_11] : memref<8x64xf32, #tpu.memory_space<vmem>>, vector<8x64xf32>
    %cst_12 = arith.constant dense<0.000000e+00> : vector<8x32xf32>
    %16 = tpu.matmul %15, %14, %cst_12 {dimension_numbers = #tpu.dot_dimension_numbers<[1], [0], [0], [1], [0, 0, 1, 1], [], []>} : vector<8x64xf32>, vector<64x32xf32>, vector<8x32xf32> -> vector<8x32xf32>
    %c0_13 = arith.constant 0 : index
    %c0_14 = arith.constant 0 : index
    %17 = vector.load %arg6[%c0_13, %c0_14] : memref<32x1024xf32, #tpu.memory_space<vmem>>, vector<32x1024xf32>
    %cst_15 = arith.constant dense<0.000000e+00> : vector<8x1024xf32>
    %18 = tpu.matmul %16, %17, %cst_15 {dimension_numbers = #tpu.dot_dimension_numbers<[1], [0], [0], [1], [0, 0, 1, 1], [], []>} : vector<8x32xf32>, vector<32x1024xf32>, vector<8x1024xf32> -> vector<8x1024xf32>
    %c0_16 = arith.constant 0 : index
    %c0_17 = arith.constant 0 : index
    %19 = vector.load %arg8[%c0_16, %c0_17] : memref<1x1024xf32, #tpu.memory_space<vmem>>, vector<1x1024xf32>
    %20 = vector.broadcast %19 : vector<1x1024xf32> to vector<8x1024xf32>
    %21 = arith.addf %18, %20 : vector<8x1024xf32>
    %c0_18 = arith.constant 0 : index
    %c0_19 = arith.constant 0 : index
    %22 = vector.load %arg7[%c0_18, %c0_19] : memref<32x128xf32, #tpu.memory_space<vmem>>, vector<32x128xf32>
    %cst_20 = arith.constant 0.000000e+00 : f32
    %23 = vector.broadcast %cst_20 : f32 to vector<8x32xf32>
    %cst_21 = arith.constant 0.000000e+00 : f32
    %24 = vector.broadcast %cst_21 : f32 to vector<8x32xf32>
    %25 = vector.extract_strided_slice %21 {offsets = [0, 0], sizes = [8, 128], strides = [1, 1]} : vector<8x1024xf32> to vector<8x128xf32>
    %cst_22 = arith.constant dense<0.000000e+00> : vector<8x128xf32>
    %26 = tpu.matmul %23, %22, %cst_22 {dimension_numbers = #tpu.dot_dimension_numbers<[1], [0], [0], [1], [0, 0, 1, 1], [], []>} : vector<8x32xf32>, vector<32x128xf32>, vector<8x128xf32> -> vector<8x128xf32>
    %27 = arith.addf %25, %26 : vector<8x128xf32>
    %28 = vector.extract_strided_slice %27 {offsets = [0, 0], sizes = [8, 32], strides = [1, 1]} : vector<8x128xf32> to vector<8x32xf32>
    %cst_23 = arith.constant 0.000000e+00 : f32
    %29 = vector.broadcast %cst_23 : f32 to vector<8x32xf32>
    %30 = arith.subf %29, %28 : vector<8x32xf32>
    %31 = math.exp %30 : vector<8x32xf32>
    %cst_24 = arith.constant 1.000000e+00 : f32
    %32 = vector.broadcast %cst_24 : f32 to vector<8x32xf32>
    %33 = arith.addf %32, %31 : vector<8x32xf32>
    %34 = tpu.reciprocal %33 {approx = true} : vector<8x32xf32> -> vector<8x32xf32>
    %35 = vector.extract_strided_slice %27 {offsets = [0, 32], sizes = [8, 32], strides = [1, 1]} : vector<8x128xf32> to vector<8x32xf32>
    %cst_25 = arith.constant 0.000000e+00 : f32
    %36 = vector.broadcast %cst_25 : f32 to vector<8x32xf32>
    %37 = arith.subf %36, %35 : vector<8x32xf32>
    %38 = math.exp %37 : vector<8x32xf32>
    %cst_26 = arith.constant 1.000000e+00 : f32
    %39 = vector.broadcast %cst_26 : f32 to vector<8x32xf32>
    %40 = arith.addf %39, %38 : vector<8x32xf32>
    %41 = tpu.reciprocal %40 {approx = true} : vector<8x32xf32> -> vector<8x32xf32>
    %42 = vector.extract_strided_slice %27 {offsets = [0, 64], sizes = [8, 32], strides = [1, 1]} : vector<8x128xf32> to vector<8x32xf32>
    %43 = math.tanh %42 : vector<8x32xf32>
    %44 = vector.extract_strided_slice %27 {offsets = [0, 96], sizes = [8, 32], strides = [1, 1]} : vector<8x128xf32> to vector<8x32xf32>
    %cst_27 = arith.constant 0.000000e+00 : f32
    %45 = vector.broadcast %cst_27 : f32 to vector<8x32xf32>
    %46 = arith.subf %45, %44 : vector<8x32xf32>
    %47 = math.exp %46 : vector<8x32xf32>
    %cst_28 = arith.constant 1.000000e+00 : f32
    %48 = vector.broadcast %cst_28 : f32 to vector<8x32xf32>
    %49 = arith.addf %48, %47 : vector<8x32xf32>
    %50 = tpu.reciprocal %49 {approx = true} : vector<8x32xf32> -> vector<8x32xf32>
    %51 = arith.mulf %41, %24 : vector<8x32xf32>
    %52 = arith.mulf %34, %43 : vector<8x32xf32>
    %53 = arith.addf %51, %52 : vector<8x32xf32>
    %54 = math.tanh %53 : vector<8x32xf32>
    %55 = arith.mulf %50, %54 : vector<8x32xf32>
    %56 = vector.extract_strided_slice %21 {offsets = [0, 128], sizes = [8, 128], strides = [1, 1]} : vector<8x1024xf32> to vector<8x128xf32>
    %cst_29 = arith.constant dense<0.000000e+00> : vector<8x128xf32>
    %57 = tpu.matmul %55, %22, %cst_29 {dimension_numbers = #tpu.dot_dimension_numbers<[1], [0], [0], [1], [0, 0, 1, 1], [], []>} : vector<8x32xf32>, vector<32x128xf32>, vector<8x128xf32> -> vector<8x128xf32>
    %58 = arith.addf %56, %57 : vector<8x128xf32>
    %59 = vector.extract_strided_slice %58 {offsets = [0, 0], sizes = [8, 32], strides = [1, 1]} : vector<8x128xf32> to vector<8x32xf32>
    %cst_30 = arith.constant 0.000000e+00 : f32
    %60 = vector.broadcast %cst_30 : f32 to vector<8x32xf32>
    %61 = arith.subf %60, %59 : vector<8x32xf32>
    %62 = math.exp %61 : vector<8x32xf32>
    %cst_31 = arith.constant 1.000000e+00 : f32
    %63 = vector.broadcast %cst_31 : f32 to vector<8x32xf32>
    %64 = arith.addf %63, %62 : vector<8x32xf32>
    %65 = tpu.reciprocal %64 {approx = true} : vector<8x32xf32> -> vector<8x32xf32>
    %66 = vector.extract_strided_slice %58 {offsets = [0, 32], sizes = [8, 32], strides = [1, 1]} : vector<8x128xf32> to vector<8x32xf32>
    %cst_32 = arith.constant 0.000000e+00 : f32
    %67 = vector.broadcast %cst_32 : f32 to vector<8x32xf32>
    %68 = arith.subf %67, %66 : vector<8x32xf32>
    %69 = math.exp %68 : vector<8x32xf32>
    %cst_33 = arith.constant 1.000000e+00 : f32
    %70 = vector.broadcast %cst_33 : f32 to vector<8x32xf32>
    %71 = arith.addf %70, %69 : vector<8x32xf32>
    %72 = tpu.reciprocal %71 {approx = true} : vector<8x32xf32> -> vector<8x32xf32>
    %73 = vector.extract_strided_slice %58 {offsets = [0, 64], sizes = [8, 32], strides = [1, 1]} : vector<8x128xf32> to vector<8x32xf32>
    %74 = math.tanh %73 : vector<8x32xf32>
    %75 = vector.extract_strided_slice %58 {offsets = [0, 96], sizes = [8, 32], strides = [1, 1]} : vector<8x128xf32> to vector<8x32xf32>
    %cst_34 = arith.constant 0.000000e+00 : f32
    %76 = vector.broadcast %cst_34 : f32 to vector<8x32xf32>
    %77 = arith.subf %76, %75 : vector<8x32xf32>
    %78 = math.exp %77 : vector<8x32xf32>
    %cst_35 = arith.constant 1.000000e+00 : f32
    %79 = vector.broadcast %cst_35 : f32 to vector<8x32xf32>
    %80 = arith.addf %79, %78 : vector<8x32xf32>
    %81 = tpu.reciprocal %80 {approx = true} : vector<8x32xf32> -> vector<8x32xf32>
    %82 = arith.mulf %72, %53 : vector<8x32xf32>
    %83 = arith.mulf %65, %74 : vector<8x32xf32>
    %84 = arith.addf %82, %83 : vector<8x32xf32>
    %85 = math.tanh %84 : vector<8x32xf32>
    %86 = arith.mulf %81, %85 : vector<8x32xf32>
    %87 = vector.extract_strided_slice %21 {offsets = [0, 256], sizes = [8, 128], strides = [1, 1]} : vector<8x1024xf32> to vector<8x128xf32>
    %cst_36 = arith.constant dense<0.000000e+00> : vector<8x128xf32>
    %88 = tpu.matmul %86, %22, %cst_36 {dimension_numbers = #tpu.dot_dimension_numbers<[1], [0], [0], [1], [0, 0, 1, 1], [], []>} : vector<8x32xf32>, vector<32x128xf32>, vector<8x128xf32> -> vector<8x128xf32>
    %89 = arith.addf %87, %88 : vector<8x128xf32>
    %90 = vector.extract_strided_slice %89 {offsets = [0, 0], sizes = [8, 32], strides = [1, 1]} : vector<8x128xf32> to vector<8x32xf32>
    %cst_37 = arith.constant 0.000000e+00 : f32
    %91 = vector.broadcast %cst_37 : f32 to vector<8x32xf32>
    %92 = arith.subf %91, %90 : vector<8x32xf32>
    %93 = math.exp %92 : vector<8x32xf32>
    %cst_38 = arith.constant 1.000000e+00 : f32
    %94 = vector.broadcast %cst_38 : f32 to vector<8x32xf32>
    %95 = arith.addf %94, %93 : vector<8x32xf32>
    %96 = tpu.reciprocal %95 {approx = true} : vector<8x32xf32> -> vector<8x32xf32>
    %97 = vector.extract_strided_slice %89 {offsets = [0, 32], sizes = [8, 32], strides = [1, 1]} : vector<8x128xf32> to vector<8x32xf32>
    %cst_39 = arith.constant 0.000000e+00 : f32
    %98 = vector.broadcast %cst_39 : f32 to vector<8x32xf32>
    %99 = arith.subf %98, %97 : vector<8x32xf32>
    %100 = math.exp %99 : vector<8x32xf32>
    %cst_40 = arith.constant 1.000000e+00 : f32
    %101 = vector.broadcast %cst_40 : f32 to vector<8x32xf32>
    %102 = arith.addf %101, %100 : vector<8x32xf32>
    %103 = tpu.reciprocal %102 {approx = true} : vector<8x32xf32> -> vector<8x32xf32>
    %104 = vector.extract_strided_slice %89 {offsets = [0, 64], sizes = [8, 32], strides = [1, 1]} : vector<8x128xf32> to vector<8x32xf32>
    %105 = math.tanh %104 : vector<8x32xf32>
    %106 = vector.extract_strided_slice %89 {offsets = [0, 96], sizes = [8, 32], strides = [1, 1]} : vector<8x128xf32> to vector<8x32xf32>
    %cst_41 = arith.constant 0.000000e+00 : f32
    %107 = vector.broadcast %cst_41 : f32 to vector<8x32xf32>
    %108 = arith.subf %107, %106 : vector<8x32xf32>
    %109 = math.exp %108 : vector<8x32xf32>
    %cst_42 = arith.constant 1.000000e+00 : f32
    %110 = vector.broadcast %cst_42 : f32 to vector<8x32xf32>
    %111 = arith.addf %110, %109 : vector<8x32xf32>
    %112 = tpu.reciprocal %111 {approx = true} : vector<8x32xf32> -> vector<8x32xf32>
    %113 = arith.mulf %103, %84 : vector<8x32xf32>
    %114 = arith.mulf %96, %105 : vector<8x32xf32>
    %115 = arith.addf %113, %114 : vector<8x32xf32>
    %116 = math.tanh %115 : vector<8x32xf32>
    %117 = arith.mulf %112, %116 : vector<8x32xf32>
    %118 = vector.extract_strided_slice %21 {offsets = [0, 384], sizes = [8, 128], strides = [1, 1]} : vector<8x1024xf32> to vector<8x128xf32>
    %cst_43 = arith.constant dense<0.000000e+00> : vector<8x128xf32>
    %119 = tpu.matmul %117, %22, %cst_43 {dimension_numbers = #tpu.dot_dimension_numbers<[1], [0], [0], [1], [0, 0, 1, 1], [], []>} : vector<8x32xf32>, vector<32x128xf32>, vector<8x128xf32> -> vector<8x128xf32>
    %120 = arith.addf %118, %119 : vector<8x128xf32>
    %121 = vector.extract_strided_slice %120 {offsets = [0, 0], sizes = [8, 32], strides = [1, 1]} : vector<8x128xf32> to vector<8x32xf32>
    %cst_44 = arith.constant 0.000000e+00 : f32
    %122 = vector.broadcast %cst_44 : f32 to vector<8x32xf32>
    %123 = arith.subf %122, %121 : vector<8x32xf32>
    %124 = math.exp %123 : vector<8x32xf32>
    %cst_45 = arith.constant 1.000000e+00 : f32
    %125 = vector.broadcast %cst_45 : f32 to vector<8x32xf32>
    %126 = arith.addf %125, %124 : vector<8x32xf32>
    %127 = tpu.reciprocal %126 {approx = true} : vector<8x32xf32> -> vector<8x32xf32>
    %128 = vector.extract_strided_slice %120 {offsets = [0, 32], sizes = [8, 32], strides = [1, 1]} : vector<8x128xf32> to vector<8x32xf32>
    %cst_46 = arith.constant 0.000000e+00 : f32
    %129 = vector.broadcast %cst_46 : f32 to vector<8x32xf32>
    %130 = arith.subf %129, %128 : vector<8x32xf32>
    %131 = math.exp %130 : vector<8x32xf32>
    %cst_47 = arith.constant 1.000000e+00 : f32
    %132 = vector.broadcast %cst_47 : f32 to vector<8x32xf32>
    %133 = arith.addf %132, %131 : vector<8x32xf32>
    %134 = tpu.reciprocal %133 {approx = true} : vector<8x32xf32> -> vector<8x32xf32>
    %135 = vector.extract_strided_slice %120 {offsets = [0, 64], sizes = [8, 32], strides = [1, 1]} : vector<8x128xf32> to vector<8x32xf32>
    %136 = math.tanh %135 : vector<8x32xf32>
    %137 = vector.extract_strided_slice %120 {offsets = [0, 96], sizes = [8, 32], strides = [1, 1]} : vector<8x128xf32> to vector<8x32xf32>
    %cst_48 = arith.constant 0.000000e+00 : f32
    %138 = vector.broadcast %cst_48 : f32 to vector<8x32xf32>
    %139 = arith.subf %138, %137 : vector<8x32xf32>
    %140 = math.exp %139 : vector<8x32xf32>
    %cst_49 = arith.constant 1.000000e+00 : f32
    %141 = vector.broadcast %cst_49 : f32 to vector<8x32xf32>
    %142 = arith.addf %141, %140 : vector<8x32xf32>
    %143 = tpu.reciprocal %142 {approx = true} : vector<8x32xf32> -> vector<8x32xf32>
    %144 = arith.mulf %134, %115 : vector<8x32xf32>
    %145 = arith.mulf %127, %136 : vector<8x32xf32>
    %146 = arith.addf %144, %145 : vector<8x32xf32>
    %147 = math.tanh %146 : vector<8x32xf32>
    %148 = arith.mulf %143, %147 : vector<8x32xf32>
    %149 = vector.extract_strided_slice %21 {offsets = [0, 512], sizes = [8, 128], strides = [1, 1]} : vector<8x1024xf32> to vector<8x128xf32>
    %cst_50 = arith.constant dense<0.000000e+00> : vector<8x128xf32>
    %150 = tpu.matmul %148, %22, %cst_50 {dimension_numbers = #tpu.dot_dimension_numbers<[1], [0], [0], [1], [0, 0, 1, 1], [], []>} : vector<8x32xf32>, vector<32x128xf32>, vector<8x128xf32> -> vector<8x128xf32>
    %151 = arith.addf %149, %150 : vector<8x128xf32>
    %152 = vector.extract_strided_slice %151 {offsets = [0, 0], sizes = [8, 32], strides = [1, 1]} : vector<8x128xf32> to vector<8x32xf32>
    %cst_51 = arith.constant 0.000000e+00 : f32
    %153 = vector.broadcast %cst_51 : f32 to vector<8x32xf32>
    %154 = arith.subf %153, %152 : vector<8x32xf32>
    %155 = math.exp %154 : vector<8x32xf32>
    %cst_52 = arith.constant 1.000000e+00 : f32
    %156 = vector.broadcast %cst_52 : f32 to vector<8x32xf32>
    %157 = arith.addf %156, %155 : vector<8x32xf32>
    %158 = tpu.reciprocal %157 {approx = true} : vector<8x32xf32> -> vector<8x32xf32>
    %159 = vector.extract_strided_slice %151 {offsets = [0, 32], sizes = [8, 32], strides = [1, 1]} : vector<8x128xf32> to vector<8x32xf32>
    %cst_53 = arith.constant 0.000000e+00 : f32
    %160 = vector.broadcast %cst_53 : f32 to vector<8x32xf32>
    %161 = arith.subf %160, %159 : vector<8x32xf32>
    %162 = math.exp %161 : vector<8x32xf32>
    %cst_54 = arith.constant 1.000000e+00 : f32
    %163 = vector.broadcast %cst_54 : f32 to vector<8x32xf32>
    %164 = arith.addf %163, %162 : vector<8x32xf32>
    %165 = tpu.reciprocal %164 {approx = true} : vector<8x32xf32> -> vector<8x32xf32>
    %166 = vector.extract_strided_slice %151 {offsets = [0, 64], sizes = [8, 32], strides = [1, 1]} : vector<8x128xf32> to vector<8x32xf32>
    %167 = math.tanh %166 : vector<8x32xf32>
    %168 = vector.extract_strided_slice %151 {offsets = [0, 96], sizes = [8, 32], strides = [1, 1]} : vector<8x128xf32> to vector<8x32xf32>
    %cst_55 = arith.constant 0.000000e+00 : f32
    %169 = vector.broadcast %cst_55 : f32 to vector<8x32xf32>
    %170 = arith.subf %169, %168 : vector<8x32xf32>
    %171 = math.exp %170 : vector<8x32xf32>
    %cst_56 = arith.constant 1.000000e+00 : f32
    %172 = vector.broadcast %cst_56 : f32 to vector<8x32xf32>
    %173 = arith.addf %172, %171 : vector<8x32xf32>
    %174 = tpu.reciprocal %173 {approx = true} : vector<8x32xf32> -> vector<8x32xf32>
    %175 = arith.mulf %165, %146 : vector<8x32xf32>
    %176 = arith.mulf %158, %167 : vector<8x32xf32>
    %177 = arith.addf %175, %176 : vector<8x32xf32>
    %178 = math.tanh %177 : vector<8x32xf32>
    %179 = arith.mulf %174, %178 : vector<8x32xf32>
    %180 = vector.extract_strided_slice %21 {offsets = [0, 640], sizes = [8, 128], strides = [1, 1]} : vector<8x1024xf32> to vector<8x128xf32>
    %cst_57 = arith.constant dense<0.000000e+00> : vector<8x128xf32>
    %181 = tpu.matmul %179, %22, %cst_57 {dimension_numbers = #tpu.dot_dimension_numbers<[1], [0], [0], [1], [0, 0, 1, 1], [], []>} : vector<8x32xf32>, vector<32x128xf32>, vector<8x128xf32> -> vector<8x128xf32>
    %182 = arith.addf %180, %181 : vector<8x128xf32>
    %183 = vector.extract_strided_slice %182 {offsets = [0, 0], sizes = [8, 32], strides = [1, 1]} : vector<8x128xf32> to vector<8x32xf32>
    %cst_58 = arith.constant 0.000000e+00 : f32
    %184 = vector.broadcast %cst_58 : f32 to vector<8x32xf32>
    %185 = arith.subf %184, %183 : vector<8x32xf32>
    %186 = math.exp %185 : vector<8x32xf32>
    %cst_59 = arith.constant 1.000000e+00 : f32
    %187 = vector.broadcast %cst_59 : f32 to vector<8x32xf32>
    %188 = arith.addf %187, %186 : vector<8x32xf32>
    %189 = tpu.reciprocal %188 {approx = true} : vector<8x32xf32> -> vector<8x32xf32>
    %190 = vector.extract_strided_slice %182 {offsets = [0, 32], sizes = [8, 32], strides = [1, 1]} : vector<8x128xf32> to vector<8x32xf32>
    %cst_60 = arith.constant 0.000000e+00 : f32
    %191 = vector.broadcast %cst_60 : f32 to vector<8x32xf32>
    %192 = arith.subf %191, %190 : vector<8x32xf32>
    %193 = math.exp %192 : vector<8x32xf32>
    %cst_61 = arith.constant 1.000000e+00 : f32
    %194 = vector.broadcast %cst_61 : f32 to vector<8x32xf32>
    %195 = arith.addf %194, %193 : vector<8x32xf32>
    %196 = tpu.reciprocal %195 {approx = true} : vector<8x32xf32> -> vector<8x32xf32>
    %197 = vector.extract_strided_slice %182 {offsets = [0, 64], sizes = [8, 32], strides = [1, 1]} : vector<8x128xf32> to vector<8x32xf32>
    %198 = math.tanh %197 : vector<8x32xf32>
    %199 = vector.extract_strided_slice %182 {offsets = [0, 96], sizes = [8, 32], strides = [1, 1]} : vector<8x128xf32> to vector<8x32xf32>
    %cst_62 = arith.constant 0.000000e+00 : f32
    %200 = vector.broadcast %cst_62 : f32 to vector<8x32xf32>
    %201 = arith.subf %200, %199 : vector<8x32xf32>
    %202 = math.exp %201 : vector<8x32xf32>
    %cst_63 = arith.constant 1.000000e+00 : f32
    %203 = vector.broadcast %cst_63 : f32 to vector<8x32xf32>
    %204 = arith.addf %203, %202 : vector<8x32xf32>
    %205 = tpu.reciprocal %204 {approx = true} : vector<8x32xf32> -> vector<8x32xf32>
    %206 = arith.mulf %196, %177 : vector<8x32xf32>
    %207 = arith.mulf %189, %198 : vector<8x32xf32>
    %208 = arith.addf %206, %207 : vector<8x32xf32>
    %209 = math.tanh %208 : vector<8x32xf32>
    %210 = arith.mulf %205, %209 : vector<8x32xf32>
    %211 = vector.extract_strided_slice %21 {offsets = [0, 768], sizes = [8, 128], strides = [1, 1]} : vector<8x1024xf32> to vector<8x128xf32>
    %cst_64 = arith.constant dense<0.000000e+00> : vector<8x128xf32>
    %212 = tpu.matmul %210, %22, %cst_64 {dimension_numbers = #tpu.dot_dimension_numbers<[1], [0], [0], [1], [0, 0, 1, 1], [], []>} : vector<8x32xf32>, vector<32x128xf32>, vector<8x128xf32> -> vector<8x128xf32>
    %213 = arith.addf %211, %212 : vector<8x128xf32>
    %214 = vector.extract_strided_slice %213 {offsets = [0, 0], sizes = [8, 32], strides = [1, 1]} : vector<8x128xf32> to vector<8x32xf32>
    %cst_65 = arith.constant 0.000000e+00 : f32
    %215 = vector.broadcast %cst_65 : f32 to vector<8x32xf32>
    %216 = arith.subf %215, %214 : vector<8x32xf32>
    %217 = math.exp %216 : vector<8x32xf32>
    %cst_66 = arith.constant 1.000000e+00 : f32
    %218 = vector.broadcast %cst_66 : f32 to vector<8x32xf32>
    %219 = arith.addf %218, %217 : vector<8x32xf32>
    %220 = tpu.reciprocal %219 {approx = true} : vector<8x32xf32> -> vector<8x32xf32>
    %221 = vector.extract_strided_slice %213 {offsets = [0, 32], sizes = [8, 32], strides = [1, 1]} : vector<8x128xf32> to vector<8x32xf32>
    %cst_67 = arith.constant 0.000000e+00 : f32
    %222 = vector.broadcast %cst_67 : f32 to vector<8x32xf32>
    %223 = arith.subf %222, %221 : vector<8x32xf32>
    %224 = math.exp %223 : vector<8x32xf32>
    %cst_68 = arith.constant 1.000000e+00 : f32
    %225 = vector.broadcast %cst_68 : f32 to vector<8x32xf32>
    %226 = arith.addf %225, %224 : vector<8x32xf32>
    %227 = tpu.reciprocal %226 {approx = true} : vector<8x32xf32> -> vector<8x32xf32>
    %228 = vector.extract_strided_slice %213 {offsets = [0, 64], sizes = [8, 32], strides = [1, 1]} : vector<8x128xf32> to vector<8x32xf32>
    %229 = math.tanh %228 : vector<8x32xf32>
    %230 = vector.extract_strided_slice %213 {offsets = [0, 96], sizes = [8, 32], strides = [1, 1]} : vector<8x128xf32> to vector<8x32xf32>
    %cst_69 = arith.constant 0.000000e+00 : f32
    %231 = vector.broadcast %cst_69 : f32 to vector<8x32xf32>
    %232 = arith.subf %231, %230 : vector<8x32xf32>
    %233 = math.exp %232 : vector<8x32xf32>
    %cst_70 = arith.constant 1.000000e+00 : f32
    %234 = vector.broadcast %cst_70 : f32 to vector<8x32xf32>
    %235 = arith.addf %234, %233 : vector<8x32xf32>
    %236 = tpu.reciprocal %235 {approx = true} : vector<8x32xf32> -> vector<8x32xf32>
    %237 = arith.mulf %227, %208 : vector<8x32xf32>
    %238 = arith.mulf %220, %229 : vector<8x32xf32>
    %239 = arith.addf %237, %238 : vector<8x32xf32>
    %240 = math.tanh %239 : vector<8x32xf32>
    %241 = arith.mulf %236, %240 : vector<8x32xf32>
    %242 = vector.extract_strided_slice %21 {offsets = [0, 896], sizes = [8, 128], strides = [1, 1]} : vector<8x1024xf32> to vector<8x128xf32>
    %cst_71 = arith.constant dense<0.000000e+00> : vector<8x128xf32>
    %243 = tpu.matmul %241, %22, %cst_71 {dimension_numbers = #tpu.dot_dimension_numbers<[1], [0], [0], [1], [0, 0, 1, 1], [], []>} : vector<8x32xf32>, vector<32x128xf32>, vector<8x128xf32> -> vector<8x128xf32>
    %244 = arith.addf %242, %243 : vector<8x128xf32>
    %245 = vector.extract_strided_slice %244 {offsets = [0, 0], sizes = [8, 32], strides = [1, 1]} : vector<8x128xf32> to vector<8x32xf32>
    %cst_72 = arith.constant 0.000000e+00 : f32
    %246 = vector.broadcast %cst_72 : f32 to vector<8x32xf32>
    %247 = arith.subf %246, %245 : vector<8x32xf32>
    %248 = math.exp %247 : vector<8x32xf32>
    %cst_73 = arith.constant 1.000000e+00 : f32
    %249 = vector.broadcast %cst_73 : f32 to vector<8x32xf32>
    %250 = arith.addf %249, %248 : vector<8x32xf32>
    %251 = tpu.reciprocal %250 {approx = true} : vector<8x32xf32> -> vector<8x32xf32>
    %252 = vector.extract_strided_slice %244 {offsets = [0, 32], sizes = [8, 32], strides = [1, 1]} : vector<8x128xf32> to vector<8x32xf32>
    %cst_74 = arith.constant 0.000000e+00 : f32
    %253 = vector.broadcast %cst_74 : f32 to vector<8x32xf32>
    %254 = arith.subf %253, %252 : vector<8x32xf32>
    %255 = math.exp %254 : vector<8x32xf32>
    %cst_75 = arith.constant 1.000000e+00 : f32
    %256 = vector.broadcast %cst_75 : f32 to vector<8x32xf32>
    %257 = arith.addf %256, %255 : vector<8x32xf32>
    %258 = tpu.reciprocal %257 {approx = true} : vector<8x32xf32> -> vector<8x32xf32>
    %259 = vector.extract_strided_slice %244 {offsets = [0, 64], sizes = [8, 32], strides = [1, 1]} : vector<8x128xf32> to vector<8x32xf32>
    %260 = math.tanh %259 : vector<8x32xf32>
    %261 = vector.extract_strided_slice %244 {offsets = [0, 96], sizes = [8, 32], strides = [1, 1]} : vector<8x128xf32> to vector<8x32xf32>
    %cst_76 = arith.constant 0.000000e+00 : f32
    %262 = vector.broadcast %cst_76 : f32 to vector<8x32xf32>
    %263 = arith.subf %262, %261 : vector<8x32xf32>
    %264 = math.exp %263 : vector<8x32xf32>
    %cst_77 = arith.constant 1.000000e+00 : f32
    %265 = vector.broadcast %cst_77 : f32 to vector<8x32xf32>
    %266 = arith.addf %265, %264 : vector<8x32xf32>
    %267 = tpu.reciprocal %266 {approx = true} : vector<8x32xf32> -> vector<8x32xf32>
    %268 = arith.mulf %258, %239 : vector<8x32xf32>
    %269 = arith.mulf %251, %260 : vector<8x32xf32>
    %270 = arith.addf %268, %269 : vector<8x32xf32>
    %271 = math.tanh %270 : vector<8x32xf32>
    %272 = arith.mulf %267, %271 : vector<8x32xf32>
    %c0_78 = arith.constant 0 : index
    %c0_79 = arith.constant 0 : index
    %273 = vector.load %arg9[%c0_78, %c0_79] : memref<32x128xf32, #tpu.memory_space<vmem>>, vector<32x128xf32>
    %cst_80 = arith.constant dense<0.000000e+00> : vector<8x128xf32>
    %274 = tpu.matmul %272, %273, %cst_80 {dimension_numbers = #tpu.dot_dimension_numbers<[1], [0], [0], [1], [0, 0, 1, 1], [], []>} : vector<8x32xf32>, vector<32x128xf32>, vector<8x128xf32> -> vector<8x128xf32>
    %c0_81 = arith.constant 0 : index
    %c0_82 = arith.constant 0 : index
    %275 = vector.load %arg10[%c0_81, %c0_82] : memref<1x128xf32, #tpu.memory_space<vmem>>, vector<1x128xf32>
    %276 = vector.broadcast %275 : vector<1x128xf32> to vector<8x128xf32>
    %277 = arith.addf %274, %276 : vector<8x128xf32>
    %c0_83 = arith.constant 0 : index
    %c0_84 = arith.constant 0 : index
    %278 = vector.load %arg11[%c0_83, %c0_84] : memref<8x128xf32, #tpu.memory_space<vmem>>, vector<8x128xf32>
    tpu.vector_store %arg11[%c0_83, %c0_84], %277 {strides = array<i32>} : memref<8x128xf32, #tpu.memory_space<vmem>>, vector<8x128xf32>,
    return
  }
  func.func @transform_0(%arg0: i32) -> (i32, i32) {
    %c0_i32 = arith.constant 0 : i32
    %c0_i32_0 = arith.constant 0 : i32
    %c0_i32_1 = arith.constant 0 : i32
    return %c0_i32, %c0_i32_0 : i32, i32
  }
  func.func @transform_1(%arg0: i32) -> (i32, i32) {
    %c0_i32 = arith.constant 0 : i32
    %c0_i32_0 = arith.constant 0 : i32
    %c0_i32_1 = arith.constant 0 : i32
    return %c0_i32, %c0_i32_0 : i32, i32
  }
  func.func @transform_2(%arg0: i32) -> (i32, i32) {
    %c0_i32 = arith.constant 0 : i32
    %c0_i32_0 = arith.constant 0 : i32
    %c0_i32_1 = arith.constant 0 : i32
    return %c0_i32, %c0_i32_0 : i32, i32
  }
  func.func @transform_3(%arg0: i32) -> (i32, i32) {
    %c0_i32 = arith.constant 0 : i32
    %c0_i32_0 = arith.constant 0 : i32
    %c0_i32_1 = arith.constant 0 : i32
    return %c0_i32, %c0_i32_0 : i32, i32
  }
  func.func @transform_4(%arg0: i32) -> (i32, i32) {
    %c0_i32 = arith.constant 0 : i32
    %c0_i32_0 = arith.constant 0 : i32
    %c0_i32_1 = arith.constant 0 : i32
    return %c0_i32, %c0_i32_0 : i32, i32
  }
  func.func @transform_5(%arg0: i32) -> (i32, i32) {
    %c0_i32 = arith.constant 0 : i32
    %c0_i32_0 = arith.constant 0 : i32
    %c0_i32_1 = arith.constant 0 : i32
    return %c0_i32, %c0_i32_0 : i32, i32
  }
  func.func @transform_6(%arg0: i32) -> (i32, i32) {
    %c0_i32 = arith.constant 0 : i32
    %c0_i32_0 = arith.constant 0 : i32
    %c0_i32_1 = arith.constant 0 : i32
    return %c0_i32, %c0_i32_0 : i32, i32
  }
  func.func @transform_7(%arg0: i32) -> (i32, i32) {
    %c0_i32 = arith.constant 0 : i32
    %c0_i32_0 = arith.constant 0 : i32
    %c0_i32_1 = arith.constant 0 : i32
    return %c0_i32, %c0_i32_0 : i32, i32
  }
  func.func @transform_8(%arg0: i32) -> (i32, i32) {
    %c0_i32 = arith.constant 0 : i32
    %c0_i32_0 = arith.constant 0 : i32
    %c0_i32_1 = arith.constant 0 : i32
    return %c0_i32, %c0_i32_0 : i32, i32
  }
  func.func @transform_9(%arg0: i32) -> (i32, i32) {
    %c0_i32 = arith.constant 0 : i32
    %c0_i32_0 = arith.constant 0 : i32
    %c0_i32_1 = arith.constant 0 : i32
    return %c0_i32, %c0_i32_0 : i32, i32
  }
  func.func @transform_10(%arg0: i32) -> (i32, i32) {
    %c0_i32 = arith.constant 0 : i32
    %c0_i32_0 = arith.constant 0 : i32
    %c0_i32_1 = arith.constant 0 : i32
    return %c0_i32, %c0_i32_0 : i32, i32
  }
}

</mosaic_0001>

<llo_original>
// kernel: tile.12
$region0: #{tile.12}
  #allocation0 [shape = 's32[1]{0}', space=sflag, size = 0x4, scoped, tag = 'scoped memory for tile.12']
  %s0 = inlined_call_operand.vmem [shape: f32[4], index: 0, kind: input, shape index: {}]
  %s1 = inlined_call_operand.vmem [shape: f32[16,4], index: 1, kind: output, shape index: {}]
  // Predicated region
  $region2: #{tile.12} parent=0 // pred_check
    _
  $region3: #{tile.12} parent=0 // pred_check_branch
    %3 = sbr.rel (0) target = $region5
  $region4: #{tile.12} parent=0 // pred_region
    _
  $region5: #{tile.12} parent=0 // pred_fallthru
    _
  %v4 = vld [vmem:[%s0] ss:$0 sm:$0xff]
  %5 = vst [vmem:[%s1] sm:$0xff] %v4
  %s6 = scalar_lea.vmem %s1, 8
  %7 = vst [vmem:[%s6] sm:$0xff] %v4

// kernel: tile.13
$region0: #{tile.13}
  %s0 = inlined_call_operand.vmem [shape: f32[16,4], index: 0, kind: input, shape index: {}]
  %s1 = inlined_call_operand.vmem [shape: f32[1,64], index: 1, kind: output, shape index: {}]
  $region1: #{tile.13} parent=0
    #allocation0 [shape = 'u8[4096]{0}', space=vmem, size = 0x1000, scoped, tag = 'scoped mem for output reshape']
    %v2 = vld [vmem:[%s0] sm:$0x1]
    %vm3 = vcmask 31744
    %4 = vst.msk [vmem:[#allocation0] sm:$0x1] %vm3, %v2
    %s5 = scalar_lea.vmem %s0, 15
    %v6 = vld [vmem:[%s5] sm:$0x1]
    %7 = vrot.lane.b32.xlu0 %v6, 60
    %v8 = vpop.permute.xlu0 %7
    %vm9 = vcmask 523744
    %10 = vst.msk [vmem:[#allocation0] sm:$0x1] %vm9, %v8
    %s11 = scalar_lea.vmem %s0, 14
    %v12 = vld [vmem:[%s11] sm:$0x1]
    %13 = vrot.lane.b32.xlu0 %v12, 56
    %v14 = vpop.permute.xlu0 %13
    %vm15 = vcmask 490944
    %16 = vst.msk [vmem:[#allocation0] sm:$0x1] %vm15, %v14
    %s17 = scalar_lea.vmem %s0, 13
    %v18 = vld [vmem:[%s17] sm:$0x1]
    %19 = vrot.lane.b32.xlu0 %v18, 52
    %v20 = vpop.permute.xlu0 %19
    %vm21 = vcmask 458144
    %22 = vst.msk [vmem:[#allocation0] sm:$0x1] %vm21, %v20
    %s23 = scalar_lea.vmem %s0, 12
    %v24 = vld [vmem:[%s23] sm:$0x1]
    %25 = vrot.lane.b32.xlu0 %v24, 48
    %v26 = vpop.permute.xlu0 %25
    %vm27 = vcmask 425344
    %28 = vst.msk [vmem:[#allocation0] sm:$0x1] %vm27, %v26
    %s29 = scalar_lea.vmem %s0, 11
    %v30 = vld [vmem:[%s29] sm:$0x1]
    %31 = vrot.lane.b32.xlu0 %v30, 44
    %v32 = vpop.permute.xlu0 %31
    %vm33 = vcmask 392544
    %34 = vst.msk [vmem:[#allocation0] sm:$0x1] %vm33, %v32
    %s35 = scalar_lea.vmem %s0, 10
    %v36 = vld [vmem:[%s35] sm:$0x1]
    %37 = vrot.lane.b32.xlu0 %v36, 40
    %v38 = vpop.permute.xlu0 %37
    %vm39 = vcmask 359744
    %40 = vst.msk [vmem:[#allocation0] sm:$0x1] %vm39, %v38
    %s41 = scalar_lea.vmem %s0, 9
    %v42 = vld [vmem:[%s41] sm:$0x1]
    %43 = vrot.lane.b32.xlu0 %v42, 36
    %v44 = vpop.permute.xlu0 %43
    %vm45 = vcmask 326944
    %46 = vst.msk [vmem:[#allocation0] sm:$0x1] %vm45, %v44
    %s47 = scalar_lea.vmem %s0, 8
    %v48 = vld [vmem:[%s47] sm:$0x1]
    %49 = vrot.lane.b32.xlu0 %v48, 32
    %v50 = vpop.permute.xlu0 %49
    %vm51 = vcmask 294144
    %52 = vst.msk [vmem:[#allocation0] sm:$0x1] %vm51, %v50
    %s53 = scalar_lea.vmem %s0, 7
    %v54 = vld [vmem:[%s53] sm:$0x1]
    %55 = vrot.lane.b32.xlu0 %v54, 28
    %v56 = vpop.permute.xlu0 %55
    %vm57 = vcmask 261344
    %58 = vst.msk [vmem:[#allocation0] sm:$0x1] %vm57, %v56
    %s59 = scalar_lea.vmem %s0, 6
    %v60 = vld [vmem:[%s59] sm:$0x1]
    %61 = vrot.lane.b32.xlu0 %v60, 24
    %v62 = vpop.permute.xlu0 %61
    %vm63 = vcmask 228544
    %64 = vst.msk [vmem:[#allocation0] sm:$0x1] %vm63, %v62
    %s65 = scalar_lea.vmem %s0, 5
    %v66 = vld [vmem:[%s65] sm:$0x1]
    %67 = vrot.lane.b32.xlu0 %v66, 20
    %v68 = vpop.permute.xlu0 %67
    %vm69 = vcmask 195744
    %70 = vst.msk [vmem:[#allocation0] sm:$0x1] %vm69, %v68
    %s71 = scalar_lea.vmem %s0, 4
    %v72 = vld [vmem:[%s71] sm:$0x1]
    %73 = vrot.lane.b32.xlu0 %v72, 16
    %v74 = vpop.permute.xlu0 %73
    %vm75 = vcmask 162944
    %76 = vst.msk [vmem:[#allocation0] sm:$0x1] %vm75, %v74
    %s77 = scalar_lea.vmem %s0, 3
    %v78 = vld [vmem:[%s77] sm:$0x1]
    %79 = vrot.lane.b32.xlu0 %v78, 12
    %v80 = vpop.permute.xlu0 %79
    %vm81 = vcmask 130144
    %82 = vst.msk [vmem:[#allocation0] sm:$0x1] %vm81, %v80
    %s83 = scalar_lea.vmem %s0, 2
    %v84 = vld [vmem:[%s83] sm:$0x1]
    %85 = vrot.lane.b32.xlu0 %v84, 8
    %v86 = vpop.permute.xlu0 %85
    %vm87 = vcmask 97344
    %88 = vst.msk [vmem:[#allocation0] sm:$0x1] %vm87, %v86
    %s89 = scalar_lea.vmem %s0, 1
    %v90 = vld [vmem:[%s89] sm:$0x1]
    %91 = vrot.lane.b32.xlu0 %v90, 4
    %v92 = vpop.permute.xlu0 %91
    %vm93 = vcmask 64544
    %94 = vst.msk [vmem:[#allocation0] sm:$0x1] %vm93, %v92
    %s96 = sshllo.u32 0, 1
    %v98 = vld [vmem:[#allocation0] sm:%s96]
    %s99 = sshllo.u32 0, 1
    %100 = vst [vmem:[%s1] sm:%s99] %v98

// kernel: cnn_lstm_forward.1
$region0: #{cnn_lstm_forward.1}
  #allocation0 [shape = 'u32[]', space=smem, size = 0x4, offset = 0x4, fixed_abs, tag = 'smem constant byte address 0x4 - core index']
  #allocation1 [shape = 'u32[144,128]{1,0:T(1,128)}', space=vmem, size = 0x12000, scoped, tag = 'internal scratch']
  %s0 = inlined_call_operand.vmem [shape: f32[128,64], index: 0, kind: input, shape index: {}]
  %s1 = inlined_call_operand.vmem [shape: f32[64,64], index: 1, kind: input, shape index: {}]
  %s2 = inlined_call_operand.vmem [shape: f32[64,64], index: 2, kind: input, shape index: {}]
  %s3 = inlined_call_operand.vmem [shape: f32[128,128], index: 3, kind: input, shape index: {}]
  %s4 = inlined_call_operand.vmem [shape: f32[8,64], index: 4, kind: input, shape index: {}]
  %s5 = inlined_call_operand.vmem [shape: f32[32,1024], index: 5, kind: input, shape index: {}]
  %s6 = inlined_call_operand.vmem [shape: f32[32,128], index: 6, kind: input, shape index: {}]
  %s7 = inlined_call_operand.vmem [shape: f32[1,1024], index: 7, kind: input, shape index: {}]
  %s8 = inlined_call_operand.vmem [shape: f32[32,128], index: 8, kind: input, shape index: {}]
  %s9 = inlined_call_operand.vmem [shape: f32[1,128], index: 9, kind: input, shape index: {}]
  %s10 = inlined_call_operand.vmem [shape: f32[8,128], index: 10, kind: output, shape index: {}]
  %s11 = sld [smem:[#allocation0]]
  $region50: #{cnn_lstm_forward.1} parent=0
    _
  %s13 = ssub.s32 1, %s11
  %s14 = scalar_select 0, %s13, %s11
  // Predicated region
  $region2: #{cnn_lstm_forward.1} parent=0 // pred_check
    _
  $region3: #{cnn_lstm_forward.1} parent=0 // pred_check_branch
    %16 = sbr.rel (0) target = $region5
  $region4: #{cnn_lstm_forward.1} parent=0 // pred_region
    _
  $region5: #{cnn_lstm_forward.1} parent=0 // pred_fallthru
    _
  // Predicated region
  $region6: #{cnn_lstm_forward.1} parent=0 // pred_check
    _
  $region7: #{cnn_lstm_forward.1} parent=0 // pred_check_branch
    %18 = sbr.rel (0) target = $region9
  $region8: #{cnn_lstm_forward.1} parent=0 // pred_region
    _
  $region9: #{cnn_lstm_forward.1} parent=0 // pred_fallthru
    _
  // Predicated region
  $region10: #{cnn_lstm_forward.1} parent=0 // pred_check
    _
  $region11: #{cnn_lstm_forward.1} parent=0 // pred_check_branch
    %20 = sbr.rel (0) target = $region13
  $region12: #{cnn_lstm_forward.1} parent=0 // pred_region
    _
  $region13: #{cnn_lstm_forward.1} parent=0 // pred_fallthru
    _
  // Predicated region
  $region14: #{cnn_lstm_forward.1} parent=0 // pred_check
    _
  $region15: #{cnn_lstm_forward.1} parent=0 // pred_check_branch
    %22 = sbr.rel (0) target = $region17
  $region16: #{cnn_lstm_forward.1} parent=0 // pred_region
    _
  $region17: #{cnn_lstm_forward.1} parent=0 // pred_fallthru
    _
  // Predicated region
  $region18: #{cnn_lstm_forward.1} parent=0 // pred_check
    _
  $region19: #{cnn_lstm_forward.1} parent=0 // pred_check_branch
    %24 = sbr.rel (0) target = $region21
  $region20: #{cnn_lstm_forward.1} parent=0 // pred_region
    _
  $region21: #{cnn_lstm_forward.1} parent=0 // pred_fallthru
    _
  // Predicated region
  $region22: #{cnn_lstm_forward.1} parent=0 // pred_check
    _
  $region23: #{cnn_lstm_forward.1} parent=0 // pred_check_branch
    %26 = sbr.rel (0) target = $region25
  $region24: #{cnn_lstm_forward.1} parent=0 // pred_region
    _
  $region25: #{cnn_lstm_forward.1} parent=0 // pred_fallthru
    _
  // Predicated region
  $region26: #{cnn_lstm_forward.1} parent=0 // pred_check
    _
  $region27: #{cnn_lstm_forward.1} parent=0 // pred_check_branch
    %28 = sbr.rel (0) target = $region29
  $region28: #{cnn_lstm_forward.1} parent=0 // pred_region
    _
  $region29: #{cnn_lstm_forward.1} parent=0 // pred_fallthru
    _
  // Predicated region
  $region30: #{cnn_lstm_forward.1} parent=0 // pred_check
    _
  $region31: #{cnn_lstm_forward.1} parent=0 // pred_check_branch
    %30 = sbr.rel (0) target = $region33
  $region32: #{cnn_lstm_forward.1} parent=0 // pred_region
    _
  $region33: #{cnn_lstm_forward.1} parent=0 // pred_fallthru
    _
  // Predicated region
  $region34: #{cnn_lstm_forward.1} parent=0 // pred_check
    _
  $region35: #{cnn_lstm_forward.1} parent=0 // pred_check_branch
    %32 = sbr.rel (0) target = $region37
  $region36: #{cnn_lstm_forward.1} parent=0 // pred_region
    _
  $region37: #{cnn_lstm_forward.1} parent=0 // pred_fallthru
    _
  // Predicated region
  $region38: #{cnn_lstm_forward.1} parent=0 // pred_check
    _
  $region39: #{cnn_lstm_forward.1} parent=0 // pred_check_branch
    %34 = sbr.rel (0) target = $region41
  $region40: #{cnn_lstm_forward.1} parent=0 // pred_region
    _
  $region41: #{cnn_lstm_forward.1} parent=0 // pred_fallthru
    _
  %v35 = vld [vmem:[%s0] sm:$0xff]
  %v36 = vld [vmem:[%s0 + $0x8] sm:$0xff]
  %v37 = vld [vmem:[%s0 + $0x10] sm:$0xff]
  %v38 = vld [vmem:[%s0 + $0x18] sm:$0xff]
  %v39 = vld [vmem:[%s0 + $0x20] sm:$0xff]
  %v40 = vld [vmem:[%s0 + $0x28] sm:$0xff]
  %v41 = vld [vmem:[%s0 + $0x30] sm:$0xff]
  %v42 = vld [vmem:[%s0 + $0x38] sm:$0xff]
  %v43 = vld [vmem:[%s0 + $0x40] sm:$0xff]
  %v44 = vld [vmem:[%s0 + $0x48] sm:$0xff]
  %v45 = vld [vmem:[%s0 + $0x50] sm:$0xff]
  %v46 = vld [vmem:[%s0 + $0x58] sm:$0xff]
  %v47 = vld [vmem:[%s0 + $0x60] sm:$0xff]
  %v48 = vld [vmem:[%s0 + $0x68] sm:$0xff]
  %v49 = vld [vmem:[%s0 + $0x70] sm:$0xff]
  %v50 = vld [vmem:[%s0 + $0x78] sm:$0xff]
  %v51 = vld [vmem:[%s1] sm:$0xff]
  %v52 = vld [vmem:[%s1 + $0x8] sm:$0xff]
  %v53 = vld [vmem:[%s1 + $0x10] sm:$0xff]
  %v54 = vld [vmem:[%s1 + $0x18] sm:$0xff]
  %v55 = vld [vmem:[%s1 + $0x20] sm:$0xff]
  %v56 = vld [vmem:[%s1 + $0x28] sm:$0xff]
  %v57 = vld [vmem:[%s1 + $0x30] sm:$0xff]
  %v58 = vld [vmem:[%s1 + $0x38] sm:$0xff]
  %vm59 = vcmask 523264
  %v61 = vsel %vm59, %v35, 0
  %v64 = vsel %vm59, %v36, 0
  %v67 = vsel %vm59, %v37, 0
  %v70 = vsel %vm59, %v38, 0
  %v73 = vsel %vm59, %v39, 0
  %v76 = vsel %vm59, %v40, 0
  %v79 = vsel %vm59, %v41, 0
  %v82 = vsel %vm59, %v42, 0
  %v85 = vsel %vm59, %v43, 0
  %v88 = vsel %vm59, %v44, 0
  %v91 = vsel %vm59, %v45, 0
  %v94 = vsel %vm59, %v46, 0
  %v97 = vsel %vm59, %v47, 0
  %v100 = vsel %vm59, %v48, 0
  %v103 = vsel %vm59, %v49, 0
  %v106 = vsel %vm59, %v50, 0
  %108 = vmatprep.subr.mxu0 0.0
  %109 = vmatpush1.msra.mxu0 %v51
  %110 = vmatprep.subr.mxu0 0.0
  %111 = vmatpush1.msra.mxu0 %v52
  %112 = vmatprep.subr.mxu0 0.0
  %113 = vmatpush1.msra.mxu0 %v53
  %114 = vmatprep.subr.mxu0 0.0
  %115 = vmatpush1.msra.mxu0 %v54
  %116 = vmatprep.subr.mxu0 0.0
  %117 = vmatpush1.msra.mxu0 %v55
  %118 = vmatprep.subr.mxu0 0.0
  %119 = vmatpush1.msra.mxu0 %v56
  %120 = vmatprep.subr.mxu0 0.0
  %121 = vmatpush1.msra.mxu0 %v57
  %122 = vmatprep.subr.mxu0 0.0
  %123 = vmatpush1.msra.mxu0 %v58
  %124 = vmatprep.subr.mxu0 0.0
  %125 = vmatpush1.msra.mxu0 0.0
  %126 = vmatprep.subr.mxu0 0.0
  %127 = vmatpush1.msra.mxu0 0.0
  %128 = vmatprep.subr.mxu0 0.0
  %129 = vmatpush1.msra.mxu0 0.0
  %130 = vmatprep.subr.mxu0 0.0
  %131 = vmatpush1.msra.mxu0 0.0
  %132 = vmatprep.subr.mxu0 0.0
  %133 = vmatpush1.msra.mxu0 0.0
  %134 = vmatprep.subr.mxu0 0.0
  %135 = vmatpush1.msra.mxu0 0.0
  %136 = vmatprep.subr.mxu0 0.0
  %137 = vmatpush1.msra.mxu0 0.0
  %138 = vmatprep.subr.mxu0 0.0
  %139 = vmatpush1.msra.mxu0 0.0
  %140 = vmatprep.subr.mxu0 0.0
  %141 = vmatpush1.msra.mxu0 0.0
  %142 = vmatprep.subr.mxu0 0.0
  %143 = vmatpush1.msra.mxu0 0.0
  %144 = vmatprep.subr.mxu0 0.0
  %145 = vmatpush1.msra.mxu0 0.0
  %146 = vmatprep.subr.mxu0 0.0
  %147 = vmatpush1.msra.mxu0 0.0
  %148 = vmatprep.subr.mxu0 0.0
  %149 = vmatpush1.msra.mxu0 0.0
  %150 = vmatprep.subr.mxu0 0.0
  %151 = vmatpush1.msra.mxu0 0.0
  %152 = vmatprep.subr.mxu0 0.0
  %153 = vmatpush1.msra.mxu0 0.0
  %154 = vmatprep.subr.mxu0 0.0
  %155 = vmatpush1.msra.mxu0 0.0
  %156 = vmatprep.subr.mxu0 0.0
  %157 = vmatpush1.msra.mxu0 0.0
  %158 = vmatprep.subr.mxu0 0.0
  %159 = vmatpush1.msra.mxu0 0.0
  %160 = vmatprep.subr.mxu0 0.0
  %161 = vmatpush1.msra.mxu0 0.0
  %162 = vmatprep.subr.mxu0 0.0
  %163 = vmatpush1.msra.mxu0 0.0
  %164 = vmatprep.subr.mxu0 0.0
  %165 = vmatpush1.msra.mxu0 0.0
  %166 = vmatprep.subr.mxu0 0.0
  %167 = vmatpush1.msra.mxu0 0.0
  %168 = vmatprep.subr.mxu0 0.0
  %169 = vmatpush1.msra.mxu0 0.0
  %170 = vmatprep.subr.mxu0 0.0
  %171 = vmatpush1.msra.mxu0 0.0
  %172 = vmatprep.mubr.f32.mxu0 0.0
  %173 = vmatmul.mubr.f32.gmra.mrb[0].mxu0 %v61
  %v174 = vpop.f32.mrb[0].mxu0
  %v175 = vadd.f32 0.0, %v174
  %v176 = vpop.f32.mrb[0].mxu0
  %177 = vmatprep.mubr.f32.mxu0 0.0
  %178 = vmatmul.mubr.f32.gmra.mrb[0].mxu0 %v64
  %v179 = vpop.f32.mrb[0].mxu0
  %v180 = vadd.f32 0.0, %v179
  %v181 = vpop.f32.mrb[0].mxu0
  %182 = vmatprep.mubr.f32.mxu0 0.0
  %183 = vmatmul.mubr.f32.gmra.mrb[0].mxu0 %v67
  %v184 = vpop.f32.mrb[0].mxu0
  %v185 = vadd.f32 0.0, %v184
  %v186 = vpop.f32.mrb[0].mxu0
  %187 = vmatprep.mubr.f32.mxu0 0.0
  %188 = vmatmul.mubr.f32.gmra.mrb[0].mxu0 %v70
  %v189 = vpop.f32.mrb[0].mxu0
  %v190 = vadd.f32 0.0, %v189
  %v191 = vpop.f32.mrb[0].mxu0
  %192 = vmatprep.mubr.f32.mxu0 0.0
  %193 = vmatmul.mubr.f32.gmra.mrb[0].mxu0 %v73
  %v194 = vpop.f32.mrb[0].mxu0
  %v195 = vadd.f32 0.0, %v194
  %v196 = vpop.f32.mrb[0].mxu0
  %197 = vmatprep.mubr.f32.mxu0 0.0
  %198 = vmatmul.mubr.f32.gmra.mrb[0].mxu0 %v76
  %v199 = vpop.f32.mrb[0].mxu0
  %v200 = vadd.f32 0.0, %v199
  %v201 = vpop.f32.mrb[0].mxu0
  %202 = vmatprep.mubr.f32.mxu0 0.0
  %203 = vmatmul.mubr.f32.gmra.mrb[0].mxu0 %v79
  %v204 = vpop.f32.mrb[0].mxu0
  %v205 = vadd.f32 0.0, %v204
  %v206 = vpop.f32.mrb[0].mxu0
  %207 = vmatprep.mubr.f32.mxu0 0.0
  %208 = vmatmul.mubr.f32.gmra.mrb[0].mxu0 %v82
  %v209 = vpop.f32.mrb[0].mxu0
  %v210 = vadd.f32 0.0, %v209
  %v211 = vpop.f32.mrb[0].mxu0
  %212 = vmatprep.mubr.f32.mxu0 0.0
  %213 = vmatmul.mubr.f32.gmra.mrb[0].mxu0 %v85
  %v214 = vpop.f32.mrb[0].mxu0
  %v215 = vadd.f32 0.0, %v214
  %v216 = vpop.f32.mrb[0].mxu0
  %217 = vmatprep.mubr.f32.mxu0 0.0
  %218 = vmatmul.mubr.f32.gmra.mrb[0].mxu0 %v88
  %v219 = vpop.f32.mrb[0].mxu0
  %v220 = vadd.f32 0.0, %v219
  %v221 = vpop.f32.mrb[0].mxu0
  %222 = vmatprep.mubr.f32.mxu0 0.0
  %223 = vmatmul.mubr.f32.gmra.mrb[0].mxu0 %v91
  %v224 = vpop.f32.mrb[0].mxu0
  %v225 = vadd.f32 0.0, %v224
  %v226 = vpop.f32.mrb[0].mxu0
  %227 = vmatprep.mubr.f32.mxu0 0.0
  %228 = vmatmul.mubr.f32.gmra.mrb[0].mxu0 %v94
  %v229 = vpop.f32.mrb[0].mxu0
  %v230 = vadd.f32 0.0, %v229
  %v231 = vpop.f32.mrb[0].mxu0
  %232 = vmatprep.mubr.f32.mxu0 0.0
  %233 = vmatmul.mubr.f32.gmra.mrb[0].mxu0 %v97
  %v234 = vpop.f32.mrb[0].mxu0
  %v235 = vadd.f32 0.0, %v234
  %v236 = vpop.f32.mrb[0].mxu0
  %237 = vmatprep.mubr.f32.mxu0 0.0
  %238 = vmatmul.mubr.f32.gmra.mrb[0].mxu0 %v100
  %v239 = vpop.f32.mrb[0].mxu0
  %v240 = vadd.f32 0.0, %v239
  %v241 = vpop.f32.mrb[0].mxu0
  %242 = vmatprep.mubr.f32.mxu0 0.0
  %243 = vmatmul.mubr.f32.gmra.mrb[0].mxu0 %v103
  %v244 = vpop.f32.mrb[0].mxu0
  %v245 = vadd.f32 0.0, %v244
  %v246 = vpop.f32.mrb[0].mxu0
  %247 = vmatprep.mubr.f32.mxu0 0.0
  %248 = vmatmul.mubr.f32.gmra.mrb[0].mxu0 %v106
  %v249 = vpop.f32.mrb[0].mxu0
  %v250 = vadd.f32 0.0, %v249
  %v251 = vpop.f32.mrb[0].mxu0
  %252 = vdwg.mxu0
  %v253 = vmax.f32 %v175, 0.0
  %v254 = vmax.f32 %v180, 0.0
  %v255 = vmax.f32 %v185, 0.0
  %v256 = vmax.f32 %v190, 0.0
  %v257 = vmax.f32 %v195, 0.0
  %v258 = vmax.f32 %v200, 0.0
  %v259 = vmax.f32 %v205, 0.0
  %v260 = vmax.f32 %v210, 0.0
  %v261 = vmax.f32 %v215, 0.0
  %v262 = vmax.f32 %v220, 0.0
  %v263 = vmax.f32 %v225, 0.0
  %v264 = vmax.f32 %v230, 0.0
  %v265 = vmax.f32 %v235, 0.0
  %v266 = vmax.f32 %v240, 0.0
  %v267 = vmax.f32 %v245, 0.0
  %v268 = vmax.f32 %v250, 0.0
  %v269 = vld [vmem:[%s2] sm:$0xff]
  %v270 = vld [vmem:[%s2 + $0x8] sm:$0xff]
  %v271 = vld [vmem:[%s2 + $0x10] sm:$0xff]
  %v272 = vld [vmem:[%s2 + $0x18] sm:$0xff]
  %v273 = vld [vmem:[%s2 + $0x20] sm:$0xff]
  %v274 = vld [vmem:[%s2 + $0x28] sm:$0xff]
  %v275 = vld [vmem:[%s2 + $0x30] sm:$0xff]
  %v276 = vld [vmem:[%s2 + $0x38] sm:$0xff]
  %v278 = vsel %vm59, %v253, 0
  %v281 = vsel %vm59, %v254, 0
  %v284 = vsel %vm59, %v255, 0
  %v287 = vsel %vm59, %v256, 0
  %v290 = vsel %vm59, %v257, 0
  %v293 = vsel %vm59, %v258, 0
  %v296 = vsel %vm59, %v259, 0
  %v299 = vsel %vm59, %v260, 0
  %v302 = vsel %vm59, %v261, 0
  %v305 = vsel %vm59, %v262, 0
  %v308 = vsel %vm59, %v263, 0
  %v311 = vsel %vm59, %v264, 0
  %v314 = vsel %vm59, %v265, 0
  %v317 = vsel %vm59, %v266, 0
  %v320 = vsel %vm59, %v267, 0
  %v323 = vsel %vm59, %v268, 0
  %325 = vmatprep.subr.mxu0 0.0
  %326 = vmatpush1.msra.mxu0 %v269
  %327 = vmatprep.subr.mxu0 0.0
  %328 = vmatpush1.msra.mxu0 %v270
  %329 = vmatprep.subr.mxu0 0.0
  %330 = vmatpush1.msra.mxu0 %v271
  %331 = vmatprep.subr.mxu0 0.0
  %332 = vmatpush1.msra.mxu0 %v272
  %333 = vmatprep.subr.mxu0 0.0
  %334 = vmatpush1.msra.mxu0 %v273
  %335 = vmatprep.subr.mxu0 0.0
  %336 = vmatpush1.msra.mxu0 %v274
  %337 = vmatprep.subr.mxu0 0.0
  %338 = vmatpush1.msra.mxu0 %v275
  %339 = vmatprep.subr.mxu0 0.0
  %340 = vmatpush1.msra.mxu0 %v276
  %341 = vmatprep.subr.mxu0 0.0
  %342 = vmatpush1.msra.mxu0 0.0
  %343 = vmatprep.subr.mxu0 0.0
  %344 = vmatpush1.msra.mxu0 0.0
  %345 = vmatprep.subr.mxu0 0.0
  %346 = vmatpush1.msra.mxu0 0.0
  %347 = vmatprep.subr.mxu0 0.0
  %348 = vmatpush1.msra.mxu0 0.0
  %349 = vmatprep.subr.mxu0 0.0
  %350 = vmatpush1.msra.mxu0 0.0
  %351 = vmatprep.subr.mxu0 0.0
  %352 = vmatpush1.msra.mxu0 0.0
  %353 = vmatprep.subr.mxu0 0.0
  %354 = vmatpush1.msra.mxu0 0.0
  %355 = vmatprep.subr.mxu0 0.0
  %356 = vmatpush1.msra.mxu0 0.0
  %357 = vmatprep.subr.mxu0 0.0
  %358 = vmatpush1.msra.mxu0 0.0
  %359 = vmatprep.subr.mxu0 0.0
  %360 = vmatpush1.msra.mxu0 0.0
  %361 = vmatprep.subr.mxu0 0.0
  %362 = vmatpush1.msra.mxu0 0.0
  %363 = vmatprep.subr.mxu0 0.0
  %364 = vmatpush1.msra.mxu0 0.0
  %365 = vmatprep.subr.mxu0 0.0
  %366 = vmatpush1.msra.mxu0 0.0
  %367 = vmatprep.subr.mxu0 0.0
  %368 = vmatpush1.msra.mxu0 0.0
  %369 = vmatprep.subr.mxu0 0.0
  %370 = vmatpush1.msra.mxu0 0.0
  %371 = vmatprep.subr.mxu0 0.0
  %372 = vmatpush1.msra.mxu0 0.0
  %373 = vmatprep.subr.mxu0 0.0
  %374 = vmatpush1.msra.mxu0 0.0
  %375 = vmatprep.subr.mxu0 0.0
  %376 = vmatpush1.msra.mxu0 0.0
  %377 = vmatprep.subr.mxu0 0.0
  %378 = vmatpush1.msra.mxu0 0.0
  %379 = vmatprep.subr.mxu0 0.0
  %380 = vmatpush1.msra.mxu0 0.0
  %381 = vmatprep.subr.mxu0 0.0
  %382 = vmatpush1.msra.mxu0 0.0
  %383 = vmatprep.subr.mxu0 0.0
  %384 = vmatpush1.msra.mxu0 0.0
  %385 = vmatprep.subr.mxu0 0.0
  %386 = vmatpush1.msra.mxu0 0.0
  %387 = vmatprep.subr.mxu0 0.0
  %388 = vmatpush1.msra.mxu0 0.0
  %389 = vmatprep.mubr.f32.mxu0 0.0
  %390 = vmatmul.mubr.f32.gmra.mrb[0].mxu0 %v278
  %v391 = vpop.f32.mrb[0].mxu0
  %v392 = vadd.f32 0.0, %v391
  %v393 = vpop.f32.mrb[0].mxu0
  %394 = vmatprep.mubr.f32.mxu0 0.0
  %395 = vmatmul.mubr.f32.gmra.mrb[0].mxu0 %v281
  %v396 = vpop.f32.mrb[0].mxu0
  %v397 = vadd.f32 0.0, %v396
  %v398 = vpop.f32.mrb[0].mxu0
  %399 = vmatprep.mubr.f32.mxu0 0.0
  %400 = vmatmul.mubr.f32.gmra.mrb[0].mxu0 %v284
  %v401 = vpop.f32.mrb[0].mxu0
  %v402 = vadd.f32 0.0, %v401
  %v403 = vpop.f32.mrb[0].mxu0
  %404 = vmatprep.mubr.f32.mxu0 0.0
  %405 = vmatmul.mubr.f32.gmra.mrb[0].mxu0 %v287
  %v406 = vpop.f32.mrb[0].mxu0
  %v407 = vadd.f32 0.0, %v406
  %v408 = vpop.f32.mrb[0].mxu0
  %409 = vmatprep.mubr.f32.mxu0 0.0
  %410 = vmatmul.mubr.f32.gmra.mrb[0].mxu0 %v290
  %v411 = vpop.f32.mrb[0].mxu0
  %v412 = vadd.f32 0.0, %v411
  %v413 = vpop.f32.mrb[0].mxu0
  %414 = vmatprep.mubr.f32.mxu0 0.0
  %415 = vmatmul.mubr.f32.gmra.mrb[0].mxu0 %v293
  %v416 = vpop.f32.mrb[0].mxu0
  %v417 = vadd.f32 0.0, %v416
  %v418 = vpop.f32.mrb[0].mxu0
  %419 = vmatprep.mubr.f32.mxu0 0.0
  %420 = vmatmul.mubr.f32.gmra.mrb[0].mxu0 %v296
  %v421 = vpop.f32.mrb[0].mxu0
  %v422 = vadd.f32 0.0, %v421
  %v423 = vpop.f32.mrb[0].mxu0
  %424 = vmatprep.mubr.f32.mxu0 0.0
  %425 = vmatmul.mubr.f32.gmra.mrb[0].mxu0 %v299
  %v426 = vpop.f32.mrb[0].mxu0
  %v427 = vadd.f32 0.0, %v426
  %v428 = vpop.f32.mrb[0].mxu0
  %429 = vmatprep.mubr.f32.mxu0 0.0
  %430 = vmatmul.mubr.f32.gmra.mrb[0].mxu0 %v302
  %v431 = vpop.f32.mrb[0].mxu0
  %v432 = vadd.f32 0.0, %v431
  %v433 = vpop.f32.mrb[0].mxu0
  %434 = vmatprep.mubr.f32.mxu0 0.0
  %435 = vmatmul.mubr.f32.gmra.mrb[0].mxu0 %v305
  %v436 = vpop.f32.mrb[0].mxu0
  %v437 = vadd.f32 0.0, %v436
  %v438 = vpop.f32.mrb[0].mxu0
  %439 = vmatprep.mubr.f32.mxu0 0.0
  %440 = vmatmul.mubr.f32.gmra.mrb[0].mxu0 %v308
  %v441 = vpop.f32.mrb[0].mxu0
  %v442 = vadd.f32 0.0, %v441
  %v443 = vpop.f32.mrb[0].mxu0
  %444 = vmatprep.mubr.f32.mxu0 0.0
  %445 = vmatmul.mubr.f32.gmra.mrb[0].mxu0 %v311
  %v446 = vpop.f32.mrb[0].mxu0
  %v447 = vadd.f32 0.0, %v446
  %v448 = vpop.f32.mrb[0].mxu0
  %449 = vmatprep.mubr.f32.mxu0 0.0
  %450 = vmatmul.mubr.f32.gmra.mrb[0].mxu0 %v314
  %v451 = vpop.f32.mrb[0].mxu0
  %v452 = vadd.f32 0.0, %v451
  %v453 = vpop.f32.mrb[0].mxu0
  %454 = vmatprep.mubr.f32.mxu0 0.0
  %455 = vmatmul.mubr.f32.gmra.mrb[0].mxu0 %v317
  %v456 = vpop.f32.mrb[0].mxu0
  %v457 = vadd.f32 0.0, %v456
  %v458 = vpop.f32.mrb[0].mxu0
  %459 = vmatprep.mubr.f32.mxu0 0.0
  %460 = vmatmul.mubr.f32.gmra.mrb[0].mxu0 %v320
  %v461 = vpop.f32.mrb[0].mxu0
  %v462 = vadd.f32 0.0, %v461
  %v463 = vpop.f32.mrb[0].mxu0
  %464 = vmatprep.mubr.f32.mxu0 0.0
  %465 = vmatmul.mubr.f32.gmra.mrb[0].mxu0 %v323
  %v466 = vpop.f32.mrb[0].mxu0
  %v467 = vadd.f32 0.0, %v466
  %v468 = vpop.f32.mrb[0].mxu0
  %469 = vdwg.mxu0
  %486 = vrot.lane.b32.xlu0 %v392, 96
  %v487 = vpop.permute.xlu0 %486
  %488 = vrot.lane.b32.xlu0 %v397, 96
  %v489 = vpop.permute.xlu0 %488
  %490 = vrot.lane.b32.xlu0 %v402, 96
  %v491 = vpop.permute.xlu0 %490
  %492 = vrot.lane.b32.xlu0 %v407, 96
  %v493 = vpop.permute.xlu0 %492
  %494 = vrot.lane.b32.xlu0 %v412, 96
  %v495 = vpop.permute.xlu0 %494
  %496 = vrot.lane.b32.xlu0 %v417, 96
  %v497 = vpop.permute.xlu0 %496
  %498 = vrot.lane.b32.xlu0 %v422, 96
  %v499 = vpop.permute.xlu0 %498
  %500 = vrot.lane.b32.xlu0 %v427, 96
  %v501 = vpop.permute.xlu0 %500
  %502 = vrot.lane.b32.xlu0 %v432, 96
  %v503 = vpop.permute.xlu0 %502
  %504 = vrot.lane.b32.xlu0 %v437, 96
  %v505 = vpop.permute.xlu0 %504
  %506 = vrot.lane.b32.xlu0 %v442, 96
  %v507 = vpop.permute.xlu0 %506
  %508 = vrot.lane.b32.xlu0 %v447, 96
  %v509 = vpop.permute.xlu0 %508
  %510 = vrot.lane.b32.xlu0 %v452, 96
  %v511 = vpop.permute.xlu0 %510
  %512 = vrot.lane.b32.xlu0 %v457, 96
  %v513 = vpop.permute.xlu0 %512
  %514 = vrot.lane.b32.xlu0 %v462, 96
  %v515 = vpop.permute.xlu0 %514
  %516 = vrot.lane.b32.xlu0 %v467, 96
  %v517 = vpop.permute.xlu0 %516
  %v534 = vmax.f32 %v392, %v487
  %v535 = vmax.f32 %v397, %v489
  %v536 = vmax.f32 %v402, %v491
  %v537 = vmax.f32 %v407, %v493
  %v538 = vmax.f32 %v412, %v495
  %v539 = vmax.f32 %v417, %v497
  %v540 = vmax.f32 %v422, %v499
  %v541 = vmax.f32 %v427, %v501
  %v542 = vmax.f32 %v432, %v503
  %v543 = vmax.f32 %v437, %v505
  %v544 = vmax.f32 %v442, %v507
  %v545 = vmax.f32 %v447, %v509
  %v546 = vmax.f32 %v452, %v511
  %v547 = vmax.f32 %v457, %v513
  %v548 = vmax.f32 %v462, %v515
  %v549 = vmax.f32 %v467, %v517
  %v550 = vld [vmem:[%s3] sm:$0xff]
  %v551 = vld [vmem:[%s3 + $0x8] sm:$0xff]
  %v552 = vld [vmem:[%s3 + $0x10] sm:$0xff]
  %v553 = vld [vmem:[%s3 + $0x18] sm:$0xff]
  %v554 = vld [vmem:[%s3 + $0x20] sm:$0xff]
  %v555 = vld [vmem:[%s3 + $0x28] sm:$0xff]
  %v556 = vld [vmem:[%s3 + $0x30] sm:$0xff]
  %v557 = vld [vmem:[%s3 + $0x38] sm:$0xff]
  %v558 = vld [vmem:[%s3 + $0x40] sm:$0xff]
  %v559 = vld [vmem:[%s3 + $0x48] sm:$0xff]
  %v560 = vld [vmem:[%s3 + $0x50] sm:$0xff]
  %v561 = vld [vmem:[%s3 + $0x58] sm:$0xff]
  %v562 = vld [vmem:[%s3 + $0x60] sm:$0xff]
  %v563 = vld [vmem:[%s3 + $0x68] sm:$0xff]
  %v564 = vld [vmem:[%s3 + $0x70] sm:$0xff]
  %v565 = vld [vmem:[%s3 + $0x78] sm:$0xff]
  %566 = vmatprep.subr.mxu0 0.0
  %567 = vmatpush1.msra.mxu0 %v534
  %568 = vmatprep.subr.mxu0 0.0
  %569 = vmatpush1.msra.mxu0 %v535
  %570 = vmatprep.subr.mxu0 0.0
  %571 = vmatpush1.msra.mxu0 %v536
  %572 = vmatprep.subr.mxu0 0.0
  %573 = vmatpush1.msra.mxu0 %v537
  %574 = vmatprep.subr.mxu0 0.0
  %575 = vmatpush1.msra.mxu0 %v538
  %576 = vmatprep.subr.mxu0 0.0
  %577 = vmatpush1.msra.mxu0 %v539
  %578 = vmatprep.subr.mxu0 0.0
  %579 = vmatpush1.msra.mxu0 %v540
  %580 = vmatprep.subr.mxu0 0.0
  %581 = vmatpush1.msra.mxu0 %v541
  %582 = vmatprep.subr.mxu0 0.0
  %583 = vmatpush1.msra.mxu0 %v542
  %584 = vmatprep.subr.mxu0 0.0
  %585 = vmatpush1.msra.mxu0 %v543
  %586 = vmatprep.subr.mxu0 0.0
  %587 = vmatpush1.msra.mxu0 %v544
  %588 = vmatprep.subr.mxu0 0.0
  %589 = vmatpush1.msra.mxu0 %v545
  %590 = vmatprep.subr.mxu0 0.0
  %591 = vmatpush1.msra.mxu0 %v546
  %592 = vmatprep.subr.mxu0 0.0
  %593 = vmatpush1.msra.mxu0 %v547
  %594 = vmatprep.subr.mxu0 0.0
  %595 = vmatpush1.msra.mxu0 %v548
  %596 = vmatprep.subr.mxu0 0.0
  %597 = vmatpush1.msra.mxu0 %v549
  %598 = vmatprep.subr.mxu0 0.0
  %599 = vmatpush1.msra.mxu0 0.0
  %600 = vmatprep.subr.mxu0 0.0
  %601 = vmatpush1.msra.mxu0 0.0
  %602 = vmatprep.subr.mxu0 0.0
  %603 = vmatpush1.msra.mxu0 0.0
  %604 = vmatprep.subr.mxu0 0.0
  %605 = vmatpush1.msra.mxu0 0.0
  %606 = vmatprep.subr.mxu0 0.0
  %607 = vmatpush1.msra.mxu0 0.0
  %608 = vmatprep.subr.mxu0 0.0
  %609 = vmatpush1.msra.mxu0 0.0
  %610 = vmatprep.subr.mxu0 0.0
  %611 = vmatpush1.msra.mxu0 0.0
  %612 = vmatprep.subr.mxu0 0.0
  %613 = vmatpush1.msra.mxu0 0.0
  %614 = vmatprep.subr.mxu0 0.0
  %615 = vmatpush1.msra.mxu0 0.0
  %616 = vmatprep.subr.mxu0 0.0
  %617 = vmatpush1.msra.mxu0 0.0
  %618 = vmatprep.subr.mxu0 0.0
  %619 = vmatpush1.msra.mxu0 0.0
  %620 = vmatprep.subr.mxu0 0.0
  %621 = vmatpush1.msra.mxu0 0.0
  %622 = vmatprep.subr.mxu0 0.0
  %623 = vmatpush1.msra.mxu0 0.0
  %624 = vmatprep.subr.mxu0 0.0
  %625 = vmatpush1.msra.mxu0 0.0
  %626 = vmatprep.subr.mxu0 0.0
  %627 = vmatpush1.msra.mxu0 0.0
  %628 = vmatprep.subr.mxu0 0.0
  %629 = vmatpush1.msra.mxu0 0.0
  %630 = vmatprep.mubr.f32.mxu0 0.0
  %631 = vmatmul.mubr.f32.gmra.mrb[0].mxu0 %v550
  %v632 = vpop.f32.mrb[0].mxu0
  %v633 = vadd.f32 0.0, %v632
  %v634 = vpop.f32.mrb[0].mxu0
  %635 = vmatprep.mubr.f32.mxu0 0.0
  %636 = vmatmul.mubr.f32.gmra.mrb[0].mxu0 %v551
  %v637 = vpop.f32.mrb[0].mxu0
  %v638 = vadd.f32 0.0, %v637
  %v639 = vpop.f32.mrb[0].mxu0
  %640 = vmatprep.mubr.f32.mxu0 0.0
  %641 = vmatmul.mubr.f32.gmra.mrb[0].mxu0 %v552
  %v642 = vpop.f32.mrb[0].mxu0
  %v643 = vadd.f32 0.0, %v642
  %v644 = vpop.f32.mrb[0].mxu0
  %645 = vmatprep.mubr.f32.mxu0 0.0
  %646 = vmatmul.mubr.f32.gmra.mrb[0].mxu0 %v553
  %v647 = vpop.f32.mrb[0].mxu0
  %v648 = vadd.f32 0.0, %v647
  %v649 = vpop.f32.mrb[0].mxu0
  %650 = vmatprep.mubr.f32.mxu0 0.0
  %651 = vmatmul.mubr.f32.gmra.mrb[0].mxu0 %v554
  %v652 = vpop.f32.mrb[0].mxu0
  %v653 = vadd.f32 0.0, %v652
  %v654 = vpop.f32.mrb[0].mxu0
  %655 = vmatprep.mubr.f32.mxu0 0.0
  %656 = vmatmul.mubr.f32.gmra.mrb[0].mxu0 %v555
  %v657 = vpop.f32.mrb[0].mxu0
  %v658 = vadd.f32 0.0, %v657
  %v659 = vpop.f32.mrb[0].mxu0
  %660 = vmatprep.mubr.f32.mxu0 0.0
  %661 = vmatmul.mubr.f32.gmra.mrb[0].mxu0 %v556
  %v662 = vpop.f32.mrb[0].mxu0
  %v663 = vadd.f32 0.0, %v662
  %v664 = vpop.f32.mrb[0].mxu0
  %665 = vmatprep.mubr.f32.mxu0 0.0
  %666 = vmatmul.mubr.f32.gmra.mrb[0].mxu0 %v557
  %v667 = vpop.f32.mrb[0].mxu0
  %v668 = vadd.f32 0.0, %v667
  %v669 = vpop.f32.mrb[0].mxu0
  %670 = vmatprep.mubr.f32.mxu0 0.0
  %671 = vmatmul.mubr.f32.gmra.mrb[0].mxu0 %v558
  %v672 = vpop.f32.mrb[0].mxu0
  %v673 = vadd.f32 0.0, %v672
  %v674 = vpop.f32.mrb[0].mxu0
  %675 = vmatprep.mubr.f32.mxu0 0.0
  %676 = vmatmul.mubr.f32.gmra.mrb[0].mxu0 %v559
  %v677 = vpop.f32.mrb[0].mxu0
  %v678 = vadd.f32 0.0, %v677
  %v679 = vpop.f32.mrb[0].mxu0
  %680 = vmatprep.mubr.f32.mxu0 0.0
  %681 = vmatmul.mubr.f32.gmra.mrb[0].mxu0 %v560
  %v682 = vpop.f32.mrb[0].mxu0
  %v683 = vadd.f32 0.0, %v682
  %v684 = vpop.f32.mrb[0].mxu0
  %685 = vmatprep.mubr.f32.mxu0 0.0
  %686 = vmatmul.mubr.f32.gmra.mrb[0].mxu0 %v561
  %v687 = vpop.f32.mrb[0].mxu0
  %v688 = vadd.f32 0.0, %v687
  %v689 = vpop.f32.mrb[0].mxu0
  %690 = vmatprep.mubr.f32.mxu0 0.0
  %691 = vmatmul.mubr.f32.gmra.mrb[0].mxu0 %v562
  %v692 = vpop.f32.mrb[0].mxu0
  %v693 = vadd.f32 0.0, %v692
  %v694 = vpop.f32.mrb[0].mxu0
  %695 = vmatprep.mubr.f32.mxu0 0.0
  %696 = vmatmul.mubr.f32.gmra.mrb[0].mxu0 %v563
  %v697 = vpop.f32.mrb[0].mxu0
  %v698 = vadd.f32 0.0, %v697
  %v699 = vpop.f32.mrb[0].mxu0
  %700 = vmatprep.mubr.f32.mxu0 0.0
  %701 = vmatmul.mubr.f32.gmra.mrb[0].mxu0 %v564
  %v702 = vpop.f32.mrb[0].mxu0
  %v703 = vadd.f32 0.0, %v702
  %v704 = vpop.f32.mrb[0].mxu0
  %705 = vmatprep.mubr.f32.mxu0 0.0
  %706 = vmatmul.mubr.f32.gmra.mrb[0].mxu0 %v565
  %v707 = vpop.f32.mrb[0].mxu0
  %v708 = vadd.f32 0.0, %v707
  %v709 = vpop.f32.mrb[0].mxu0
  %710 = vdwg.mxu0
  %v711 = vmax.f32 %v633, %v673
  %v712 = vmax.f32 %v638, %v678
  %v713 = vmax.f32 %v643, %v683
  %v714 = vmax.f32 %v648, %v688
  %v715 = vmax.f32 %v653, %v693
  %v716 = vmax.f32 %v658, %v698
  %v717 = vmax.f32 %v663, %v703
  %v718 = vmax.f32 %v668, %v708
  %v719 = vld [vmem:[%s4] sm:$0xff]
  %v721 = vsel %vm59, %v719, 0
  %723 = vmatprep.subr.mxu0 0.0
  %724 = vmatpush1.msra.mxu0 %v711
  %725 = vmatprep.subr.mxu0 0.0
  %726 = vmatpush1.msra.mxu0 %v712
  %727 = vmatprep.subr.mxu0 0.0
  %728 = vmatpush1.msra.mxu0 %v713
  %729 = vmatprep.subr.mxu0 0.0
  %730 = vmatpush1.msra.mxu0 %v714
  %731 = vmatprep.subr.mxu0 0.0
  %732 = vmatpush1.msra.mxu0 %v715
  %733 = vmatprep.subr.mxu0 0.0
  %734 = vmatpush1.msra.mxu0 %v716
  %735 = vmatprep.subr.mxu0 0.0
  %736 = vmatpush1.msra.mxu0 %v717
  %737 = vmatprep.subr.mxu0 0.0
  %738 = vmatpush1.msra.mxu0 %v718
  %739 = vmatprep.subr.mxu0 0.0
  %740 = vmatpush1.msra.mxu0 0.0
  %741 = vmatprep.subr.mxu0 0.0
  %742 = vmatpush1.msra.mxu0 0.0
  %743 = vmatprep.subr.mxu0 0.0
  %744 = vmatpush1.msra.mxu0 0.0
  %745 = vmatprep.subr.mxu0 0.0
  %746 = vmatpush1.msra.mxu0 0.0
  %747 = vmatprep.subr.mxu0 0.0
  %748 = vmatpush1.msra.mxu0 0.0
  %749 = vmatprep.subr.mxu0 0.0
  %750 = vmatpush1.msra.mxu0 0.0
  %751 = vmatprep.subr.mxu0 0.0
  %752 = vmatpush1.msra.mxu0 0.0
  %753 = vmatprep.subr.mxu0 0.0
  %754 = vmatpush1.msra.mxu0 0.0
  %755 = vmatprep.subr.mxu0 0.0
  %756 = vmatpush1.msra.mxu0 0.0
  %757 = vmatprep.subr.mxu0 0.0
  %758 = vmatpush1.msra.mxu0 0.0
  %759 = vmatprep.subr.mxu0 0.0
  %760 = vmatpush1.msra.mxu0 0.0
  %761 = vmatprep.subr.mxu0 0.0
  %762 = vmatpush1.msra.mxu0 0.0
  %763 = vmatprep.subr.mxu0 0.0
  %764 = vmatpush1.msra.mxu0 0.0
  %765 = vmatprep.subr.mxu0 0.0
  %766 = vmatpush1.msra.mxu0 0.0
  %767 = vmatprep.subr.mxu0 0.0
  %768 = vmatpush1.msra.mxu0 0.0
  %769 = vmatprep.subr.mxu0 0.0
  %770 = vmatpush1.msra.mxu0 0.0
  %771 = vmatprep.subr.mxu0 0.0
  %772 = vmatpush1.msra.mxu0 0.0
  %773 = vmatprep.subr.mxu0 0.0
  %774 = vmatpush1.msra.mxu0 0.0
  %775 = vmatprep.subr.mxu0 0.0
  %776 = vmatpush1.msra.mxu0 0.0
  %777 = vmatprep.subr.mxu0 0.0
  %778 = vmatpush1.msra.mxu0 0.0
  %779 = vmatprep.subr.mxu0 0.0
  %780 = vmatpush1.msra.mxu0 0.0
  %781 = vmatprep.subr.mxu0 0.0
  %782 = vmatpush1.msra.mxu0 0.0
  %783 = vmatprep.subr.mxu0 0.0
  %784 = vmatpush1.msra.mxu0 0.0
  %785 = vmatprep.subr.mxu0 0.0
  %786 = vmatpush1.msra.mxu0 0.0
  %787 = vmatprep.mubr.f32.mxu0 0.0
  %788 = vmatmul.mubr.f32.gmra.mrb[0].mxu0 %v721
  %v789 = vpop.f32.mrb[0].mxu0
  %v790 = vadd.f32 0.0, %v789
  %v791 = vpop.f32.mrb[0].mxu0
  %792 = vdwg.mxu0
  %v793 = vld [vmem:[%s5] sm:$0xff]
  %v794 = vld [vmem:[%s5 + $0x8] sm:$0xff]
  %v795 = vld [vmem:[%s5 + $0x10] sm:$0xff]
  %v796 = vld [vmem:[%s5 + $0x18] sm:$0xff]
  %v797 = vld [vmem:[%s5 + $0x20] sm:$0xff]
  %v798 = vld [vmem:[%s5 + $0x28] sm:$0xff]
  %v799 = vld [vmem:[%s5 + $0x30] sm:$0xff]
  %v800 = vld [vmem:[%s5 + $0x38] sm:$0xff]
  %v801 = vld [vmem:[%s5 + $0x40] sm:$0xff]
  %v802 = vld [vmem:[%s5 + $0x48] sm:$0xff]
  %v803 = vld [vmem:[%s5 + $0x50] sm:$0xff]
  %v804 = vld [vmem:[%s5 + $0x58] sm:$0xff]
  %v805 = vld [vmem:[%s5 + $0x60] sm:$0xff]
  %v806 = vld [vmem:[%s5 + $0x68] sm:$0xff]
  %v807 = vld [vmem:[%s5 + $0x70] sm:$0xff]
  %v808 = vld [vmem:[%s5 + $0x78] sm:$0xff]
  %v809 = vld [vmem:[%s5 + $0x80] sm:$0xff]
  %v810 = vld [vmem:[%s5 + $0x88] sm:$0xff]
  %v811 = vld [vmem:[%s5 + $0x90] sm:$0xff]
  %v812 = vld [vmem:[%s5 + $0x98] sm:$0xff]
  %v813 = vld [vmem:[%s5 + $0xa0] sm:$0xff]
  %v814 = vld [vmem:[%s5 + $0xa8] sm:$0xff]
  %v815 = vld [vmem:[%s5 + $0xb0] sm:$0xff]
  %v816 = vld [vmem:[%s5 + $0xb8] sm:$0xff]
  %v817 = vld [vmem:[%s5 + $0xc0] sm:$0xff]
  %v818 = vld [vmem:[%s5 + $0xc8] sm:$0xff]
  %v819 = vld [vmem:[%s5 + $0xd0] sm:$0xff]
  %v820 = vld [vmem:[%s5 + $0xd8] sm:$0xff]
  %v821 = vld [vmem:[%s5 + $0xe0] sm:$0xff]
  %v822 = vld [vmem:[%s5 + $0xe8] sm:$0xff]
  %v823 = vld [vmem:[%s5 + $0xf0] sm:$0xff]
  %v824 = vld [vmem:[%s5 + $0xf8] sm:$0xff]
  %v825 = vld [vmem:[%s7] sm:$0xff]
  %v827 = vlaneseq
  %v828 = vshrl.u32 %v827, 7
  %v829 = vsub.s32 0, %v828
  %v830 = vrot.slane %v825, %v829
  %v831 = vlaneseq
  %v832 = vshrl.u32 %v831, 7
  %v833 = vsub.s32 1, %v832
  %v834 = vrot.slane %v825, %v833
  %v835 = vlaneseq
  %v836 = vshrl.u32 %v835, 7
  %v837 = vsub.s32 2, %v836
  %v838 = vrot.slane %v825, %v837
  %v839 = vlaneseq
  %v840 = vshrl.u32 %v839, 7
  %v841 = vsub.s32 3, %v840
  %v842 = vrot.slane %v825, %v841
  %v843 = vlaneseq
  %v844 = vshrl.u32 %v843, 7
  %v845 = vsub.s32 4, %v844
  %v846 = vrot.slane %v825, %v845
  %v847 = vlaneseq
  %v848 = vshrl.u32 %v847, 7
  %v849 = vsub.s32 5, %v848
  %v850 = vrot.slane %v825, %v849
  %v851 = vlaneseq
  %v852 = vshrl.u32 %v851, 7
  %v853 = vsub.s32 6, %v852
  %v854 = vrot.slane %v825, %v853
  %v855 = vlaneseq
  %v856 = vshrl.u32 %v855, 7
  %v857 = vsub.s32 7, %v856
  %v858 = vrot.slane %v825, %v857
  %vm867 = vcmask 261120
  %v869 = vsel %vm867, %v790, 0
  %871 = vmatprep.subr.mxu0 %v794
  %872 = vmatpush1.msra.mxu0 %v793
  %873 = vmatprep.subr.mxu0 %v802
  %874 = vmatpush1.msra.mxu0 %v801
  %875 = vmatprep.subr.mxu0 %v810
  %876 = vmatpush1.msra.mxu0 %v809
  %877 = vmatprep.subr.mxu0 %v818
  %878 = vmatpush1.msra.mxu0 %v817
  %879 = vmatprep.subr.mxu0 0.0
  %880 = vmatpush1.msra.mxu0 0.0
  %881 = vmatprep.subr.mxu0 0.0
  %882 = vmatpush1.msra.mxu0 0.0
  %883 = vmatprep.subr.mxu0 0.0
  %884 = vmatpush1.msra.mxu0 0.0
  %885 = vmatprep.subr.mxu0 0.0
  %886 = vmatpush1.msra.mxu0 0.0
  %887 = vmatprep.subr.mxu0 0.0
  %888 = vmatpush1.msra.mxu0 0.0
  %889 = vmatprep.subr.mxu0 0.0
  %890 = vmatpush1.msra.mxu0 0.0
  %891 = vmatprep.subr.mxu0 0.0
  %892 = vmatpush1.msra.mxu0 0.0
  %893 = vmatprep.subr.mxu0 0.0
  %894 = vmatpush1.msra.mxu0 0.0
  %895 = vmatprep.subr.mxu0 0.0
  %896 = vmatpush1.msra.mxu0 0.0
  %897 = vmatprep.subr.mxu0 0.0
  %898 = vmatpush1.msra.mxu0 0.0
  %899 = vmatprep.subr.mxu0 0.0
  %900 = vmatpush1.msra.mxu0 0.0
  %901 = vmatprep.subr.mxu0 0.0
  %902 = vmatpush1.msra.mxu0 0.0
  %903 = vmatprep.subr.mxu0 0.0
  %904 = vmatpush1.msra.mxu0 0.0
  %905 = vmatprep.subr.mxu0 0.0
  %906 = vmatpush1.msra.mxu0 0.0
  %907 = vmatprep.subr.mxu0 0.0
  %908 = vmatpush1.msra.mxu0 0.0
  %909 = vmatprep.subr.mxu0 0.0
  %910 = vmatpush1.msra.mxu0 0.0
  %911 = vmatprep.subr.mxu0 0.0
  %912 = vmatpush1.msra.mxu0 0.0
  %913 = vmatprep.subr.mxu0 0.0
  %914 = vmatpush1.msra.mxu0 0.0
  %915 = vmatprep.subr.mxu0 0.0
  %916 = vmatpush1.msra.mxu0 0.0
  %917 = vmatprep.subr.mxu0 0.0
  %918 = vmatpush1.msra.mxu0 0.0
  %919 = vmatprep.subr.mxu0 0.0
  %920 = vmatpush1.msra.mxu0 0.0
  %921 = vmatprep.subr.mxu0 0.0
  %922 = vmatpush1.msra.mxu0 0.0
  %923 = vmatprep.subr.mxu0 0.0
  %924 = vmatpush1.msra.mxu0 0.0
  %925 = vmatprep.subr.mxu0 0.0
  %926 = vmatpush1.msra.mxu0 0.0
  %927 = vmatprep.subr.mxu0 0.0
  %928 = vmatpush1.msra.mxu0 0.0
  %929 = vmatprep.subr.mxu0 0.0
  %930 = vmatpush1.msra.mxu0 0.0
  %931 = vmatprep.subr.mxu0 0.0
  %932 = vmatpush1.msra.mxu0 0.0
  %933 = vmatprep.subr.mxu0 0.0
  %934 = vmatpush1.msra.mxu0 0.0
  %935 = vmatprep.mubr.f32.mxu0 0.0
  %936 = vmatmul.mubr.f32.gmra.mrb[0].mxu0 %v869
  %v937 = vpop.f32.mrb[0].mxu0
  %v938 = vadd.f32 %v830, %v937
  %v939 = vpop.f32.mrb[0].mxu0
  %v940 = vadd.f32 %v834, %v939
  %941 = vdwg.mxu0
  %942 = vmatprep.subr.mxu0 %v796
  %943 = vmatpush1.msra.mxu0 %v795
  %944 = vmatprep.subr.mxu0 %v804
  %945 = vmatpush1.msra.mxu0 %v803
  %946 = vmatprep.subr.mxu0 %v812
  %947 = vmatpush1.msra.mxu0 %v811
  %948 = vmatprep.subr.mxu0 %v820
  %949 = vmatpush1.msra.mxu0 %v819
  %950 = vmatprep.subr.mxu0 0.0
  %951 = vmatpush1.msra.mxu0 0.0
  %952 = vmatprep.subr.mxu0 0.0
  %953 = vmatpush1.msra.mxu0 0.0
  %954 = vmatprep.subr.mxu0 0.0
  %955 = vmatpush1.msra.mxu0 0.0
  %956 = vmatprep.subr.mxu0 0.0
  %957 = vmatpush1.msra.mxu0 0.0
  %958 = vmatprep.subr.mxu0 0.0
  %959 = vmatpush1.msra.mxu0 0.0
  %960 = vmatprep.subr.mxu0 0.0
  %961 = vmatpush1.msra.mxu0 0.0
  %962 = vmatprep.subr.mxu0 0.0
  %963 = vmatpush1.msra.mxu0 0.0
  %964 = vmatprep.subr.mxu0 0.0
  %965 = vmatpush1.msra.mxu0 0.0
  %966 = vmatprep.subr.mxu0 0.0
  %967 = vmatpush1.msra.mxu0 0.0
  %968 = vmatprep.subr.mxu0 0.0
  %969 = vmatpush1.msra.mxu0 0.0
  %970 = vmatprep.subr.mxu0 0.0
  %971 = vmatpush1.msra.mxu0 0.0
  %972 = vmatprep.subr.mxu0 0.0
  %973 = vmatpush1.msra.mxu0 0.0
  %974 = vmatprep.subr.mxu0 0.0
  %975 = vmatpush1.msra.mxu0 0.0
  %976 = vmatprep.subr.mxu0 0.0
  %977 = vmatpush1.msra.mxu0 0.0
  %978 = vmatprep.subr.mxu0 0.0
  %979 = vmatpush1.msra.mxu0 0.0
  %980 = vmatprep.subr.mxu0 0.0
  %981 = vmatpush1.msra.mxu0 0.0
  %982 = vmatprep.subr.mxu0 0.0
  %983 = vmatpush1.msra.mxu0 0.0
  %984 = vmatprep.subr.mxu0 0.0
  %985 = vmatpush1.msra.mxu0 0.0
  %986 = vmatprep.subr.mxu0 0.0
  %987 = vmatpush1.msra.mxu0 0.0
  %988 = vmatprep.subr.mxu0 0.0
  %989 = vmatpush1.msra.mxu0 0.0
  %990 = vmatprep.subr.mxu0 0.0
  %991 = vmatpush1.msra.mxu0 0.0
  %992 = vmatprep.subr.mxu0 0.0
  %993 = vmatpush1.msra.mxu0 0.0
  %994 = vmatprep.subr.mxu0 0.0
  %995 = vmatpush1.msra.mxu0 0.0
  %996 = vmatprep.subr.mxu0 0.0
  %997 = vmatpush1.msra.mxu0 0.0
  %998 = vmatprep.subr.mxu0 0.0
  %999 = vmatpush1.msra.mxu0 0.0
  %1000 = vmatprep.subr.mxu0 0.0
  %1001 = vmatpush1.msra.mxu0 0.0
  %1002 = vmatprep.subr.mxu0 0.0
  %1003 = vmatpush1.msra.mxu0 0.0
  %1004 = vmatprep.subr.mxu0 0.0
  %1005 = vmatpush1.msra.mxu0 0.0
  %1006 = vmatprep.mubr.f32.mxu0 0.0
  %1007 = vmatmul.mubr.f32.gmra.mrb[0].mxu0 %v869
  %v1008 = vpop.f32.mrb[0].mxu0
  %v1009 = vadd.f32 %v838, %v1008
  %v1010 = vpop.f32.mrb[0].mxu0
  %v1011 = vadd.f32 %v842, %v1010
  %1012 = vdwg.mxu0
  %1013 = vmatprep.subr.mxu0 %v798
  %1014 = vmatpush1.msra.mxu0 %v797
  %1015 = vmatprep.subr.mxu0 %v806
  %1016 = vmatpush1.msra.mxu0 %v805
  %1017 = vmatprep.subr.mxu0 %v814
  %1018 = vmatpush1.msra.mxu0 %v813
  %1019 = vmatprep.subr.mxu0 %v822
  %1020 = vmatpush1.msra.mxu0 %v821
  %1021 = vmatprep.subr.mxu0 0.0
  %1022 = vmatpush1.msra.mxu0 0.0
  %1023 = vmatprep.subr.mxu0 0.0
  %1024 = vmatpush1.msra.mxu0 0.0
  %1025 = vmatprep.subr.mxu0 0.0
  %1026 = vmatpush1.msra.mxu0 0.0
  %1027 = vmatprep.subr.mxu0 0.0
  %1028 = vmatpush1.msra.mxu0 0.0
  %1029 = vmatprep.subr.mxu0 0.0
  %1030 = vmatpush1.msra.mxu0 0.0
  %1031 = vmatprep.subr.mxu0 0.0
  %1032 = vmatpush1.msra.mxu0 0.0
  %1033 = vmatprep.subr.mxu0 0.0
  %1034 = vmatpush1.msra.mxu0 0.0
  %1035 = vmatprep.subr.mxu0 0.0
  %1036 = vmatpush1.msra.mxu0 0.0
  %1037 = vmatprep.subr.mxu0 0.0
  %1038 = vmatpush1.msra.mxu0 0.0
  %1039 = vmatprep.subr.mxu0 0.0
  %1040 = vmatpush1.msra.mxu0 0.0
  %1041 = vmatprep.subr.mxu0 0.0
  %1042 = vmatpush1.msra.mxu0 0.0
  %1043 = vmatprep.subr.mxu0 0.0
  %1044 = vmatpush1.msra.mxu0 0.0
  %1045 = vmatprep.subr.mxu0 0.0
  %1046 = vmatpush1.msra.mxu0 0.0
  %1047 = vmatprep.subr.mxu0 0.0
  %1048 = vmatpush1.msra.mxu0 0.0
  %1049 = vmatprep.subr.mxu0 0.0
  %1050 = vmatpush1.msra.mxu0 0.0
  %1051 = vmatprep.subr.mxu0 0.0
  %1052 = vmatpush1.msra.mxu0 0.0
  %1053 = vmatprep.subr.mxu0 0.0
  %1054 = vmatpush1.msra.mxu0 0.0
  %1055 = vmatprep.subr.mxu0 0.0
  %1056 = vmatpush1.msra.mxu0 0.0
  %1057 = vmatprep.subr.mxu0 0.0
  %1058 = vmatpush1.msra.mxu0 0.0
  %1059 = vmatprep.subr.mxu0 0.0
  %1060 = vmatpush1.msra.mxu0 0.0
  %1061 = vmatprep.subr.mxu0 0.0
  %1062 = vmatpush1.msra.mxu0 0.0
  %1063 = vmatprep.subr.mxu0 0.0
  %1064 = vmatpush1.msra.mxu0 0.0
  %1065 = vmatprep.subr.mxu0 0.0
  %1066 = vmatpush1.msra.mxu0 0.0
  %1067 = vmatprep.subr.mxu0 0.0
  %1068 = vmatpush1.msra.mxu0 0.0
  %1069 = vmatprep.subr.mxu0 0.0
  %1070 = vmatpush1.msra.mxu0 0.0
  %1071 = vmatprep.subr.mxu0 0.0
  %1072 = vmatpush1.msra.mxu0 0.0
  %1073 = vmatprep.subr.mxu0 0.0
  %1074 = vmatpush1.msra.mxu0 0.0
  %1075 = vmatprep.subr.mxu0 0.0
  %1076 = vmatpush1.msra.mxu0 0.0
  %1077 = vmatprep.mubr.f32.mxu0 0.0
  %1078 = vmatmul.mubr.f32.gmra.mrb[0].mxu0 %v869
  %v1079 = vpop.f32.mrb[0].mxu0
  %v1080 = vadd.f32 %v846, %v1079
  %v1081 = vpop.f32.mrb[0].mxu0
  %v1082 = vadd.f32 %v850, %v1081
  %1083 = vdwg.mxu0
  %1084 = vmatprep.subr.mxu0 %v800
  %1085 = vmatpush1.msra.mxu0 %v799
  %1086 = vmatprep.subr.mxu0 %v808
  %1087 = vmatpush1.msra.mxu0 %v807
  %1088 = vmatprep.subr.mxu0 %v816
  %1089 = vmatpush1.msra.mxu0 %v815
  %1090 = vmatprep.subr.mxu0 %v824
  %1091 = vmatpush1.msra.mxu0 %v823
  %1092 = vmatprep.subr.mxu0 0.0
  %1093 = vmatpush1.msra.mxu0 0.0
  %1094 = vmatprep.subr.mxu0 0.0
  %1095 = vmatpush1.msra.mxu0 0.0
  %1096 = vmatprep.subr.mxu0 0.0
  %1097 = vmatpush1.msra.mxu0 0.0
  %1098 = vmatprep.subr.mxu0 0.0
  %1099 = vmatpush1.msra.mxu0 0.0
  %1100 = vmatprep.subr.mxu0 0.0
  %1101 = vmatpush1.msra.mxu0 0.0
  %1102 = vmatprep.subr.mxu0 0.0
  %1103 = vmatpush1.msra.mxu0 0.0
  %1104 = vmatprep.subr.mxu0 0.0
  %1105 = vmatpush1.msra.mxu0 0.0
  %1106 = vmatprep.subr.mxu0 0.0
  %1107 = vmatpush1.msra.mxu0 0.0
  %1108 = vmatprep.subr.mxu0 0.0
  %1109 = vmatpush1.msra.mxu0 0.0
  %1110 = vmatprep.subr.mxu0 0.0
  %1111 = vmatpush1.msra.mxu0 0.0
  %1112 = vmatprep.subr.mxu0 0.0
  %1113 = vmatpush1.msra.mxu0 0.0
  %1114 = vmatprep.subr.mxu0 0.0
  %1115 = vmatpush1.msra.mxu0 0.0
  %1116 = vmatprep.subr.mxu0 0.0
  %1117 = vmatpush1.msra.mxu0 0.0
  %1118 = vmatprep.subr.mxu0 0.0
  %1119 = vmatpush1.msra.mxu0 0.0
  %1120 = vmatprep.subr.mxu0 0.0
  %1121 = vmatpush1.msra.mxu0 0.0
  %1122 = vmatprep.subr.mxu0 0.0
  %1123 = vmatpush1.msra.mxu0 0.0
  %1124 = vmatprep.subr.mxu0 0.0
  %1125 = vmatpush1.msra.mxu0 0.0
  %1126 = vmatprep.subr.mxu0 0.0
  %1127 = vmatpush1.msra.mxu0 0.0
  %1128 = vmatprep.subr.mxu0 0.0
  %1129 = vmatpush1.msra.mxu0 0.0
  %1130 = vmatprep.subr.mxu0 0.0
  %1131 = vmatpush1.msra.mxu0 0.0
  %1132 = vmatprep.subr.mxu0 0.0
  %1133 = vmatpush1.msra.mxu0 0.0
  %1134 = vmatprep.subr.mxu0 0.0
  %1135 = vmatpush1.msra.mxu0 0.0
  %1136 = vmatprep.subr.mxu0 0.0
  %1137 = vmatpush1.msra.mxu0 0.0
  %1138 = vmatprep.subr.mxu0 0.0
  %1139 = vmatpush1.msra.mxu0 0.0
  %1140 = vmatprep.subr.mxu0 0.0
  %1141 = vmatpush1.msra.mxu0 0.0
  %1142 = vmatprep.subr.mxu0 0.0
  %1143 = vmatpush1.msra.mxu0 0.0
  %1144 = vmatprep.subr.mxu0 0.0
  %1145 = vmatpush1.msra.mxu0 0.0
  %1146 = vmatprep.subr.mxu0 0.0
  %1147 = vmatpush1.msra.mxu0 0.0
  %1148 = vmatprep.mubr.f32.mxu0 0.0
  %1149 = vmatmul.mubr.f32.gmra.mrb[0].mxu0 %v869
  %v1150 = vpop.f32.mrb[0].mxu0
  %v1151 = vadd.f32 %v854, %v1150
  %v1152 = vpop.f32.mrb[0].mxu0
  %v1153 = vadd.f32 %v858, %v1152
  %1154 = vdwg.mxu0
  %v1155 = vld [vmem:[%s6] sm:$0xff]
  %v1156 = vld [vmem:[%s6 + $0x8] sm:$0xff]
  %v1157 = vld [vmem:[%s6 + $0x10] sm:$0xff]
  %v1158 = vld [vmem:[%s6 + $0x18] sm:$0xff]
  %v1160 = vsel %vm867, 0.0, 0
  %1162 = vmatprep.subr.mxu0 0.0
  %1163 = vmatpush1.msra.mxu0 %v1155
  %1164 = vmatprep.subr.mxu0 0.0
  %1165 = vmatpush1.msra.mxu0 %v1156
  %1166 = vmatprep.subr.mxu0 0.0
  %1167 = vmatpush1.msra.mxu0 %v1157
  %1168 = vmatprep.subr.mxu0 0.0
  %1169 = vmatpush1.msra.mxu0 %v1158
  %1170 = vmatprep.subr.mxu0 0.0
  %1171 = vmatpush1.msra.mxu0 0.0
  %1172 = vmatprep.subr.mxu0 0.0
  %1173 = vmatpush1.msra.mxu0 0.0
  %1174 = vmatprep.subr.mxu0 0.0
  %1175 = vmatpush1.msra.mxu0 0.0
  %1176 = vmatprep.subr.mxu0 0.0
  %1177 = vmatpush1.msra.mxu0 0.0
  %1178 = vmatprep.subr.mxu0 0.0
  %1179 = vmatpush1.msra.mxu0 0.0
  %1180 = vmatprep.subr.mxu0 0.0
  %1181 = vmatpush1.msra.mxu0 0.0
  %1182 = vmatprep.subr.mxu0 0.0
  %1183 = vmatpush1.msra.mxu0 0.0
  %1184 = vmatprep.subr.mxu0 0.0
  %1185 = vmatpush1.msra.mxu0 0.0
  %1186 = vmatprep.subr.mxu0 0.0
  %1187 = vmatpush1.msra.mxu0 0.0
  %1188 = vmatprep.subr.mxu0 0.0
  %1189 = vmatpush1.msra.mxu0 0.0
  %1190 = vmatprep.subr.mxu0 0.0
  %1191 = vmatpush1.msra.mxu0 0.0
  %1192 = vmatprep.subr.mxu0 0.0
  %1193 = vmatpush1.msra.mxu0 0.0
  %1194 = vmatprep.subr.mxu0 0.0
  %1195 = vmatpush1.msra.mxu0 0.0
  %1196 = vmatprep.subr.mxu0 0.0
  %1197 = vmatpush1.msra.mxu0 0.0
  %1198 = vmatprep.subr.mxu0 0.0
  %1199 = vmatpush1.msra.mxu0 0.0
  %1200 = vmatprep.subr.mxu0 0.0
  %1201 = vmatpush1.msra.mxu0 0.0
  %1202 = vmatprep.subr.mxu0 0.0
  %1203 = vmatpush1.msra.mxu0 0.0
  %1204 = vmatprep.subr.mxu0 0.0
  %1205 = vmatpush1.msra.mxu0 0.0
  %1206 = vmatprep.subr.mxu0 0.0
  %1207 = vmatpush1.msra.mxu0 0.0
  %1208 = vmatprep.subr.mxu0 0.0
  %1209 = vmatpush1.msra.mxu0 0.0
  %1210 = vmatprep.subr.mxu0 0.0
  %1211 = vmatpush1.msra.mxu0 0.0
  %1212 = vmatprep.subr.mxu0 0.0
  %1213 = vmatpush1.msra.mxu0 0.0
  %1214 = vmatprep.subr.mxu0 0.0
  %1215 = vmatpush1.msra.mxu0 0.0
  %1216 = vmatprep.subr.mxu0 0.0
  %1217 = vmatpush1.msra.mxu0 0.0
  %1218 = vmatprep.subr.mxu0 0.0
  %1219 = vmatpush1.msra.mxu0 0.0
  %1220 = vmatprep.subr.mxu0 0.0
  %1221 = vmatpush1.msra.mxu0 0.0
  %1222 = vmatprep.subr.mxu0 0.0
  %1223 = vmatpush1.msra.mxu0 0.0
  %1224 = vmatprep.subr.mxu0 0.0
  %1225 = vmatpush1.msra.mxu0 0.0
  %1226 = vmatprep.mubr.f32.mxu0 0.0
  %1227 = vmatmul.mubr.f32.gmra.mrb[0].mxu0 %v1160
  %v1228 = vpop.f32.mrb[0].mxu0
  %v1229 = vadd.f32 0.0, %v1228
  %v1230 = vpop.f32.mrb[0].mxu0
  %1231 = vdwg.mxu0
  %v1232 = vadd.f32 %v938, %v1229
  %v1233 = vsub.f32 0.0, %v1232
  %v1234 = vmul.f32 %v1233, 1.442695
  %v1235 = vpow.pop %v1234
  %v1236 = vadd.f32 %v1235, 1.0
  %v1237 = vrcp.pop %v1236
  %v1238 = vtanh.pop %v1232
  %v1239 = vmul.f32 %v1237, 0.0
  %1241 = vrot.lane.b32.xlu0 %v1238, 64
  %v1242 = vpop.permute.xlu0 %1241
  %v1244 = vmul.f32 %v1237, %v1242
  %1246 = vrot.lane.b32.xlu0 %v1244, 32
  %v1247 = vpop.permute.xlu0 %1246
  %v1249 = vadd.f32 %v1239, %v1247
  %v1250 = vtanh.pop %v1249
  %1252 = vrot.lane.b32.xlu0 %v1250, 64
  %v1253 = vpop.permute.xlu0 %1252
  %v1255 = vmul.f32 %v1237, %v1253
  %1257 = vrot.lane.b32.xlu0 %v1255, 32
  %v1258 = vpop.permute.xlu0 %1257
  %v1259 = vsel %vm867, %v1258, 0
  %1261 = vmatprep.subr.mxu0 0.0
  %1262 = vmatpush1.msra.mxu0 %v1155
  %1263 = vmatprep.subr.mxu0 0.0
  %1264 = vmatpush1.msra.mxu0 %v1156
  %1265 = vmatprep.subr.mxu0 0.0
  %1266 = vmatpush1.msra.mxu0 %v1157
  %1267 = vmatprep.subr.mxu0 0.0
  %1268 = vmatpush1.msra.mxu0 %v1158
  %1269 = vmatprep.subr.mxu0 0.0
  %1270 = vmatpush1.msra.mxu0 0.0
  %1271 = vmatprep.subr.mxu0 0.0
  %1272 = vmatpush1.msra.mxu0 0.0
  %1273 = vmatprep.subr.mxu0 0.0
  %1274 = vmatpush1.msra.mxu0 0.0
  %1275 = vmatprep.subr.mxu0 0.0
  %1276 = vmatpush1.msra.mxu0 0.0
  %1277 = vmatprep.subr.mxu0 0.0
  %1278 = vmatpush1.msra.mxu0 0.0
  %1279 = vmatprep.subr.mxu0 0.0
  %1280 = vmatpush1.msra.mxu0 0.0
  %1281 = vmatprep.subr.mxu0 0.0
  %1282 = vmatpush1.msra.mxu0 0.0
  %1283 = vmatprep.subr.mxu0 0.0
  %1284 = vmatpush1.msra.mxu0 0.0
  %1285 = vmatprep.subr.mxu0 0.0
  %1286 = vmatpush1.msra.mxu0 0.0
  %1287 = vmatprep.subr.mxu0 0.0
  %1288 = vmatpush1.msra.mxu0 0.0
  %1289 = vmatprep.subr.mxu0 0.0
  %1290 = vmatpush1.msra.mxu0 0.0
  %1291 = vmatprep.subr.mxu0 0.0
  %1292 = vmatpush1.msra.mxu0 0.0
  %1293 = vmatprep.subr.mxu0 0.0
  %1294 = vmatpush1.msra.mxu0 0.0
  %1295 = vmatprep.subr.mxu0 0.0
  %1296 = vmatpush1.msra.mxu0 0.0
  %1297 = vmatprep.subr.mxu0 0.0
  %1298 = vmatpush1.msra.mxu0 0.0
  %1299 = vmatprep.subr.mxu0 0.0
  %1300 = vmatpush1.msra.mxu0 0.0
  %1301 = vmatprep.subr.mxu0 0.0
  %1302 = vmatpush1.msra.mxu0 0.0
  %1303 = vmatprep.subr.mxu0 0.0
  %1304 = vmatpush1.msra.mxu0 0.0
  %1305 = vmatprep.subr.mxu0 0.0
  %1306 = vmatpush1.msra.mxu0 0.0
  %1307 = vmatprep.subr.mxu0 0.0
  %1308 = vmatpush1.msra.mxu0 0.0
  %1309 = vmatprep.subr.mxu0 0.0
  %1310 = vmatpush1.msra.mxu0 0.0
  %1311 = vmatprep.subr.mxu0 0.0
  %1312 = vmatpush1.msra.mxu0 0.0
  %1313 = vmatprep.subr.mxu0 0.0
  %1314 = vmatpush1.msra.mxu0 0.0
  %1315 = vmatprep.subr.mxu0 0.0
  %1316 = vmatpush1.msra.mxu0 0.0
  %1317 = vmatprep.subr.mxu0 0.0
  %1318 = vmatpush1.msra.mxu0 0.0
  %1319 = vmatprep.subr.mxu0 0.0
  %1320 = vmatpush1.msra.mxu0 0.0
  %1321 = vmatprep.subr.mxu0 0.0
  %1322 = vmatpush1.msra.mxu0 0.0
  %1323 = vmatprep.subr.mxu0 0.0
  %1324 = vmatpush1.msra.mxu0 0.0
  %1325 = vmatprep.mubr.f32.mxu0 0.0
  %1326 = vmatmul.mubr.f32.gmra.mrb[0].mxu0 %v1259
  %v1327 = vpop.f32.mrb[0].mxu0
  %v1328 = vadd.f32 0.0, %v1327
  %v1329 = vpop.f32.mrb[0].mxu0
  %1330 = vdwg.mxu0
  %v1331 = vadd.f32 %v940, %v1328
  %v1332 = vsub.f32 0.0, %v1331
  %v1333 = vmul.f32 %v1332, 1.442695
  %v1334 = vpow.pop %v1333
  %v1335 = vadd.f32 %v1334, 1.0
  %v1336 = vrcp.pop %v1335
  %v1337 = vtanh.pop %v1331
  %v1338 = vmul.f32 %v1336, %v1249
  %1340 = vrot.lane.b32.xlu0 %v1337, 64
  %v1341 = vpop.permute.xlu0 %1340
  %v1343 = vmul.f32 %v1336, %v1341
  %1345 = vrot.lane.b32.xlu0 %v1343, 32
  %v1346 = vpop.permute.xlu0 %1345
  %v1348 = vadd.f32 %v1338, %v1346
  %v1349 = vtanh.pop %v1348
  %1351 = vrot.lane.b32.xlu0 %v1349, 64
  %v1352 = vpop.permute.xlu0 %1351
  %v1354 = vmul.f32 %v1336, %v1352
  %1356 = vrot.lane.b32.xlu0 %v1354, 32
  %v1357 = vpop.permute.xlu0 %1356
  %v1358 = vsel %vm867, %v1357, 0
  %1360 = vmatprep.subr.mxu0 0.0
  %1361 = vmatpush1.msra.mxu0 %v1155
  %1362 = vmatprep.subr.mxu0 0.0
  %1363 = vmatpush1.msra.mxu0 %v1156
  %1364 = vmatprep.subr.mxu0 0.0
  %1365 = vmatpush1.msra.mxu0 %v1157
  %1366 = vmatprep.subr.mxu0 0.0
  %1367 = vmatpush1.msra.mxu0 %v1158
  %1368 = vmatprep.subr.mxu0 0.0
  %1369 = vmatpush1.msra.mxu0 0.0
  %1370 = vmatprep.subr.mxu0 0.0
  %1371 = vmatpush1.msra.mxu0 0.0
  %1372 = vmatprep.subr.mxu0 0.0
  %1373 = vmatpush1.msra.mxu0 0.0
  %1374 = vmatprep.subr.mxu0 0.0
  %1375 = vmatpush1.msra.mxu0 0.0
  %1376 = vmatprep.subr.mxu0 0.0
  %1377 = vmatpush1.msra.mxu0 0.0
  %1378 = vmatprep.subr.mxu0 0.0
  %1379 = vmatpush1.msra.mxu0 0.0
  %1380 = vmatprep.subr.mxu0 0.0
  %1381 = vmatpush1.msra.mxu0 0.0
  %1382 = vmatprep.subr.mxu0 0.0
  %1383 = vmatpush1.msra.mxu0 0.0
  %1384 = vmatprep.subr.mxu0 0.0
  %1385 = vmatpush1.msra.mxu0 0.0
  %1386 = vmatprep.subr.mxu0 0.0
  %1387 = vmatpush1.msra.mxu0 0.0
  %1388 = vmatprep.subr.mxu0 0.0
  %1389 = vmatpush1.msra.mxu0 0.0
  %1390 = vmatprep.subr.mxu0 0.0
  %1391 = vmatpush1.msra.mxu0 0.0
  %1392 = vmatprep.subr.mxu0 0.0
  %1393 = vmatpush1.msra.mxu0 0.0
  %1394 = vmatprep.subr.mxu0 0.0
  %1395 = vmatpush1.msra.mxu0 0.0
  %1396 = vmatprep.subr.mxu0 0.0
  %1397 = vmatpush1.msra.mxu0 0.0
  %1398 = vmatprep.subr.mxu0 0.0
  %1399 = vmatpush1.msra.mxu0 0.0
  %1400 = vmatprep.subr.mxu0 0.0
  %1401 = vmatpush1.msra.mxu0 0.0
  %1402 = vmatprep.subr.mxu0 0.0
  %1403 = vmatpush1.msra.mxu0 0.0
  %1404 = vmatprep.subr.mxu0 0.0
  %1405 = vmatpush1.msra.mxu0 0.0
  %1406 = vmatprep.subr.mxu0 0.0
  %1407 = vmatpush1.msra.mxu0 0.0
  %1408 = vmatprep.subr.mxu0 0.0
  %1409 = vmatpush1.msra.mxu0 0.0
  %1410 = vmatprep.subr.mxu0 0.0
  %1411 = vmatpush1.msra.mxu0 0.0
  %1412 = vmatprep.subr.mxu0 0.0
  %1413 = vmatpush1.msra.mxu0 0.0
  %1414 = vmatprep.subr.mxu0 0.0
  %1415 = vmatpush1.msra.mxu0 0.0
  %1416 = vmatprep.subr.mxu0 0.0
  %1417 = vmatpush1.msra.mxu0 0.0
  %1418 = vmatprep.subr.mxu0 0.0
  %1419 = vmatpush1.msra.mxu0 0.0
  %1420 = vmatprep.subr.mxu0 0.0
  %1421 = vmatpush1.msra.mxu0 0.0
  %1422 = vmatprep.subr.mxu0 0.0
  %1423 = vmatpush1.msra.mxu0 0.0
  %1424 = vmatprep.mubr.f32.mxu0 0.0
  %1425 = vmatmul.mubr.f32.gmra.mrb[0].mxu0 %v1358
  %v1426 = vpop.f32.mrb[0].mxu0
  %v1427 = vadd.f32 0.0, %v1426
  %v1428 = vpop.f32.mrb[0].mxu0
  %1429 = vdwg.mxu0
  %v1430 = vadd.f32 %v1009, %v1427
  %v1431 = vsub.f32 0.0, %v1430
  %v1432 = vmul.f32 %v1431, 1.442695
  %v1433 = vpow.pop %v1432
  %v1434 = vadd.f32 %v1433, 1.0
  %v1435 = vrcp.pop %v1434
  %v1436 = vtanh.pop %v1430
  %v1437 = vmul.f32 %v1435, %v1348
  %1439 = vrot.lane.b32.xlu0 %v1436, 64
  %v1440 = vpop.permute.xlu0 %1439
  %v1442 = vmul.f32 %v1435, %v1440
  %1444 = vrot.lane.b32.xlu0 %v1442, 32
  %v1445 = vpop.permute.xlu0 %1444
  %v1447 = vadd.f32 %v1437, %v1445
  %v1448 = vtanh.pop %v1447
  %1450 = vrot.lane.b32.xlu0 %v1448, 64
  %v1451 = vpop.permute.xlu0 %1450
  %v1453 = vmul.f32 %v1435, %v1451
  %1455 = vrot.lane.b32.xlu0 %v1453, 32
  %v1456 = vpop.permute.xlu0 %1455
  %v1457 = vsel %vm867, %v1456, 0
  %1459 = vmatprep.subr.mxu0 0.0
  %1460 = vmatpush1.msra.mxu0 %v1155
  %1461 = vmatprep.subr.mxu0 0.0
  %1462 = vmatpush1.msra.mxu0 %v1156
  %1463 = vmatprep.subr.mxu0 0.0
  %1464 = vmatpush1.msra.mxu0 %v1157
  %1465 = vmatprep.subr.mxu0 0.0
  %1466 = vmatpush1.msra.mxu0 %v1158
  %1467 = vmatprep.subr.mxu0 0.0
  %1468 = vmatpush1.msra.mxu0 0.0
  %1469 = vmatprep.subr.mxu0 0.0
  %1470 = vmatpush1.msra.mxu0 0.0
  %1471 = vmatprep.subr.mxu0 0.0
  %1472 = vmatpush1.msra.mxu0 0.0
  %1473 = vmatprep.subr.mxu0 0.0
  %1474 = vmatpush1.msra.mxu0 0.0
  %1475 = vmatprep.subr.mxu0 0.0
  %1476 = vmatpush1.msra.mxu0 0.0
  %1477 = vmatprep.subr.mxu0 0.0
  %1478 = vmatpush1.msra.mxu0 0.0
  %1479 = vmatprep.subr.mxu0 0.0
  %1480 = vmatpush1.msra.mxu0 0.0
  %1481 = vmatprep.subr.mxu0 0.0
  %1482 = vmatpush1.msra.mxu0 0.0
  %1483 = vmatprep.subr.mxu0 0.0
  %1484 = vmatpush1.msra.mxu0 0.0
  %1485 = vmatprep.subr.mxu0 0.0
  %1486 = vmatpush1.msra.mxu0 0.0
  %1487 = vmatprep.subr.mxu0 0.0
  %1488 = vmatpush1.msra.mxu0 0.0
  %1489 = vmatprep.subr.mxu0 0.0
  %1490 = vmatpush1.msra.mxu0 0.0
  %1491 = vmatprep.subr.mxu0 0.0
  %1492 = vmatpush1.msra.mxu0 0.0
  %1493 = vmatprep.subr.mxu0 0.0
  %1494 = vmatpush1.msra.mxu0 0.0
  %1495 = vmatprep.subr.mxu0 0.0
  %1496 = vmatpush1.msra.mxu0 0.0
  %1497 = vmatprep.subr.mxu0 0.0
  %1498 = vmatpush1.msra.mxu0 0.0
  %1499 = vmatprep.subr.mxu0 0.0
  %1500 = vmatpush1.msra.mxu0 0.0
  %1501 = vmatprep.subr.mxu0 0.0
  %1502 = vmatpush1.msra.mxu0 0.0
  %1503 = vmatprep.subr.mxu0 0.0
  %1504 = vmatpush1.msra.mxu0 0.0
  %1505 = vmatprep.subr.mxu0 0.0
  %1506 = vmatpush1.msra.mxu0 0.0
  %1507 = vmatprep.subr.mxu0 0.0
  %1508 = vmatpush1.msra.mxu0 0.0
  %1509 = vmatprep.subr.mxu0 0.0
  %1510 = vmatpush1.msra.mxu0 0.0
  %1511 = vmatprep.subr.mxu0 0.0
  %1512 = vmatpush1.msra.mxu0 0.0
  %1513 = vmatprep.subr.mxu0 0.0
  %1514 = vmatpush1.msra.mxu0 0.0
  %1515 = vmatprep.subr.mxu0 0.0
  %1516 = vmatpush1.msra.mxu0 0.0
  %1517 = vmatprep.subr.mxu0 0.0
  %1518 = vmatpush1.msra.mxu0 0.0
  %1519 = vmatprep.subr.mxu0 0.0
  %1520 = vmatpush1.msra.mxu0 0.0
  %1521 = vmatprep.subr.mxu0 0.0
  %1522 = vmatpush1.msra.mxu0 0.0
  %1523 = vmatprep.mubr.f32.mxu0 0.0
  %1524 = vmatmul.mubr.f32.gmra.mrb[0].mxu0 %v1457
  %v1525 = vpop.f32.mrb[0].mxu0
  %v1526 = vadd.f32 0.0, %v1525
  %v1527 = vpop.f32.mrb[0].mxu0
  %1528 = vdwg.mxu0
  %v1529 = vadd.f32 %v1011, %v1526
  %v1530 = vsub.f32 0.0, %v1529
  %v1531 = vmul.f32 %v1530, 1.442695
  %v1532 = vpow.pop %v1531
  %v1533 = vadd.f32 %v1532, 1.0
  %v1534 = vrcp.pop %v1533
  %v1535 = vtanh.pop %v1529
  %v1536 = vmul.f32 %v1534, %v1447
  %1538 = vrot.lane.b32.xlu0 %v1535, 64
  %v1539 = vpop.permute.xlu0 %1538
  %v1541 = vmul.f32 %v1534, %v1539
  %1543 = vrot.lane.b32.xlu0 %v1541, 32
  %v1544 = vpop.permute.xlu0 %1543
  %v1546 = vadd.f32 %v1536, %v1544
  %v1547 = vtanh.pop %v1546
  %1549 = vrot.lane.b32.xlu0 %v1547, 64
  %v1550 = vpop.permute.xlu0 %1549
  %v1552 = vmul.f32 %v1534, %v1550
  %1554 = vrot.lane.b32.xlu0 %v1552, 32
  %v1555 = vpop.permute.xlu0 %1554
  %v1556 = vsel %vm867, %v1555, 0
  %1558 = vmatprep.subr.mxu0 0.0
  %1559 = vmatpush1.msra.mxu0 %v1155
  %1560 = vmatprep.subr.mxu0 0.0
  %1561 = vmatpush1.msra.mxu0 %v1156
  %1562 = vmatprep.subr.mxu0 0.0
  %1563 = vmatpush1.msra.mxu0 %v1157
  %1564 = vmatprep.subr.mxu0 0.0
  %1565 = vmatpush1.msra.mxu0 %v1158
  %1566 = vmatprep.subr.mxu0 0.0
  %1567 = vmatpush1.msra.mxu0 0.0
  %1568 = vmatprep.subr.mxu0 0.0
  %1569 = vmatpush1.msra.mxu0 0.0
  %1570 = vmatprep.subr.mxu0 0.0
  %1571 = vmatpush1.msra.mxu0 0.0
  %1572 = vmatprep.subr.mxu0 0.0
  %1573 = vmatpush1.msra.mxu0 0.0
  %1574 = vmatprep.subr.mxu0 0.0
  %1575 = vmatpush1.msra.mxu0 0.0
  %1576 = vmatprep.subr.mxu0 0.0
  %1577 = vmatpush1.msra.mxu0 0.0
  %1578 = vmatprep.subr.mxu0 0.0
  %1579 = vmatpush1.msra.mxu0 0.0
  %1580 = vmatprep.subr.mxu0 0.0
  %1581 = vmatpush1.msra.mxu0 0.0
  %1582 = vmatprep.subr.mxu0 0.0
  %1583 = vmatpush1.msra.mxu0 0.0
  %1584 = vmatprep.subr.mxu0 0.0
  %1585 = vmatpush1.msra.mxu0 0.0
  %1586 = vmatprep.subr.mxu0 0.0
  %1587 = vmatpush1.msra.mxu0 0.0
  %1588 = vmatprep.subr.mxu0 0.0
  %1589 = vmatpush1.msra.mxu0 0.0
  %1590 = vmatprep.subr.mxu0 0.0
  %1591 = vmatpush1.msra.mxu0 0.0
  %1592 = vmatprep.subr.mxu0 0.0
  %1593 = vmatpush1.msra.mxu0 0.0
  %1594 = vmatprep.subr.mxu0 0.0
  %1595 = vmatpush1.msra.mxu0 0.0
  %1596 = vmatprep.subr.mxu0 0.0
  %1597 = vmatpush1.msra.mxu0 0.0
  %1598 = vmatprep.subr.mxu0 0.0
  %1599 = vmatpush1.msra.mxu0 0.0
  %1600 = vmatprep.subr.mxu0 0.0
  %1601 = vmatpush1.msra.mxu0 0.0
  %1602 = vmatprep.subr.mxu0 0.0
  %1603 = vmatpush1.msra.mxu0 0.0
  %1604 = vmatprep.subr.mxu0 0.0
  %1605 = vmatpush1.msra.mxu0 0.0
  %1606 = vmatprep.subr.mxu0 0.0
  %1607 = vmatpush1.msra.mxu0 0.0
  %1608 = vmatprep.subr.mxu0 0.0
  %1609 = vmatpush1.msra.mxu0 0.0
  %1610 = vmatprep.subr.mxu0 0.0
  %1611 = vmatpush1.msra.mxu0 0.0
  %1612 = vmatprep.subr.mxu0 0.0
  %1613 = vmatpush1.msra.mxu0 0.0
  %1614 = vmatprep.subr.mxu0 0.0
  %1615 = vmatpush1.msra.mxu0 0.0
  %1616 = vmatprep.subr.mxu0 0.0
  %1617 = vmatpush1.msra.mxu0 0.0
  %1618 = vmatprep.subr.mxu0 0.0
  %1619 = vmatpush1.msra.mxu0 0.0
  %1620 = vmatprep.subr.mxu0 0.0
  %1621 = vmatpush1.msra.mxu0 0.0
  %1622 = vmatprep.mubr.f32.mxu0 0.0
  %1623 = vmatmul.mubr.f32.gmra.mrb[0].mxu0 %v1556
  %v1624 = vpop.f32.mrb[0].mxu0
  %v1625 = vadd.f32 0.0, %v1624
  %v1626 = vpop.f32.mrb[0].mxu0
  %1627 = vdwg.mxu0
  %v1628 = vadd.f32 %v1080, %v1625
  %v1629 = vsub.f32 0.0, %v1628
  %v1630 = vmul.f32 %v1629, 1.442695
  %v1631 = vpow.pop %v1630
  %v1632 = vadd.f32 %v1631, 1.0
  %v1633 = vrcp.pop %v1632
  %v1634 = vtanh.pop %v1628
  %v1635 = vmul.f32 %v1633, %v1546
  %1637 = vrot.lane.b32.xlu0 %v1634, 64
  %v1638 = vpop.permute.xlu0 %1637
  %v1640 = vmul.f32 %v1633, %v1638
  %1642 = vrot.lane.b32.xlu0 %v1640, 32
  %v1643 = vpop.permute.xlu0 %1642
  %v1645 = vadd.f32 %v1635, %v1643
  %v1646 = vtanh.pop %v1645
  %1648 = vrot.lane.b32.xlu0 %v1646, 64
  %v1649 = vpop.permute.xlu0 %1648
  %v1651 = vmul.f32 %v1633, %v1649
  %1653 = vrot.lane.b32.xlu0 %v1651, 32
  %v1654 = vpop.permute.xlu0 %1653
  %v1655 = vsel %vm867, %v1654, 0
  %1657 = vmatprep.subr.mxu0 0.0
  %1658 = vmatpush1.msra.mxu0 %v1155
  %1659 = vmatprep.subr.mxu0 0.0
  %1660 = vmatpush1.msra.mxu0 %v1156
  %1661 = vmatprep.subr.mxu0 0.0
  %1662 = vmatpush1.msra.mxu0 %v1157
  %1663 = vmatprep.subr.mxu0 0.0
  %1664 = vmatpush1.msra.mxu0 %v1158
  %1665 = vmatprep.subr.mxu0 0.0
  %1666 = vmatpush1.msra.mxu0 0.0
  %1667 = vmatprep.subr.mxu0 0.0
  %1668 = vmatpush1.msra.mxu0 0.0
  %1669 = vmatprep.subr.mxu0 0.0
  %1670 = vmatpush1.msra.mxu0 0.0
  %1671 = vmatprep.subr.mxu0 0.0
  %1672 = vmatpush1.msra.mxu0 0.0
  %1673 = vmatprep.subr.mxu0 0.0
  %1674 = vmatpush1.msra.mxu0 0.0
  %1675 = vmatprep.subr.mxu0 0.0
  %1676 = vmatpush1.msra.mxu0 0.0
  %1677 = vmatprep.subr.mxu0 0.0
  %1678 = vmatpush1.msra.mxu0 0.0
  %1679 = vmatprep.subr.mxu0 0.0
  %1680 = vmatpush1.msra.mxu0 0.0
  %1681 = vmatprep.subr.mxu0 0.0
  %1682 = vmatpush1.msra.mxu0 0.0
  %1683 = vmatprep.subr.mxu0 0.0
  %1684 = vmatpush1.msra.mxu0 0.0
  %1685 = vmatprep.subr.mxu0 0.0
  %1686 = vmatpush1.msra.mxu0 0.0
  %1687 = vmatprep.subr.mxu0 0.0
  %1688 = vmatpush1.msra.mxu0 0.0
  %1689 = vmatprep.subr.mxu0 0.0
  %1690 = vmatpush1.msra.mxu0 0.0
  %1691 = vmatprep.subr.mxu0 0.0
  %1692 = vmatpush1.msra.mxu0 0.0
  %1693 = vmatprep.subr.mxu0 0.0
  %1694 = vmatpush1.msra.mxu0 0.0
  %1695 = vmatprep.subr.mxu0 0.0
  %1696 = vmatpush1.msra.mxu0 0.0
  %1697 = vmatprep.subr.mxu0 0.0
  %1698 = vmatpush1.msra.mxu0 0.0
  %1699 = vmatprep.subr.mxu0 0.0
  %1700 = vmatpush1.msra.mxu0 0.0
  %1701 = vmatprep.subr.mxu0 0.0
  %1702 = vmatpush1.msra.mxu0 0.0
  %1703 = vmatprep.subr.mxu0 0.0
  %1704 = vmatpush1.msra.mxu0 0.0
  %1705 = vmatprep.subr.mxu0 0.0
  %1706 = vmatpush1.msra.mxu0 0.0
  %1707 = vmatprep.subr.mxu0 0.0
  %1708 = vmatpush1.msra.mxu0 0.0
  %1709 = vmatprep.subr.mxu0 0.0
  %1710 = vmatpush1.msra.mxu0 0.0
  %1711 = vmatprep.subr.mxu0 0.0
  %1712 = vmatpush1.msra.mxu0 0.0
  %1713 = vmatprep.subr.mxu0 0.0
  %1714 = vmatpush1.msra.mxu0 0.0
  %1715 = vmatprep.subr.mxu0 0.0
  %1716 = vmatpush1.msra.mxu0 0.0
  %1717 = vmatprep.subr.mxu0 0.0
  %1718 = vmatpush1.msra.mxu0 0.0
  %1719 = vmatprep.subr.mxu0 0.0
  %1720 = vmatpush1.msra.mxu0 0.0
  %1721 = vmatprep.mubr.f32.mxu0 0.0
  %1722 = vmatmul.mubr.f32.gmra.mrb[0].mxu0 %v1655
  %v1723 = vpop.f32.mrb[0].mxu0
  %v1724 = vadd.f32 0.0, %v1723
  %v1725 = vpop.f32.mrb[0].mxu0
  %1726 = vdwg.mxu0
  %v1727 = vadd.f32 %v1082, %v1724
  %v1728 = vsub.f32 0.0, %v1727
  %v1729 = vmul.f32 %v1728, 1.442695
  %v1730 = vpow.pop %v1729
  %v1731 = vadd.f32 %v1730, 1.0
  %v1732 = vrcp.pop %v1731
  %v1733 = vtanh.pop %v1727
  %v1734 = vmul.f32 %v1732, %v1645
  %1736 = vrot.lane.b32.xlu0 %v1733, 64
  %v1737 = vpop.permute.xlu0 %1736
  %v1739 = vmul.f32 %v1732, %v1737
  %1741 = vrot.lane.b32.xlu0 %v1739, 32
  %v1742 = vpop.permute.xlu0 %1741
  %v1744 = vadd.f32 %v1734, %v1742
  %v1745 = vtanh.pop %v1744
  %1747 = vrot.lane.b32.xlu0 %v1745, 64
  %v1748 = vpop.permute.xlu0 %1747
  %v1750 = vmul.f32 %v1732, %v1748
  %1752 = vrot.lane.b32.xlu0 %v1750, 32
  %v1753 = vpop.permute.xlu0 %1752
  %v1754 = vsel %vm867, %v1753, 0
  %1756 = vmatprep.subr.mxu0 0.0
  %1757 = vmatpush1.msra.mxu0 %v1155
  %1758 = vmatprep.subr.mxu0 0.0
  %1759 = vmatpush1.msra.mxu0 %v1156
  %1760 = vmatprep.subr.mxu0 0.0
  %1761 = vmatpush1.msra.mxu0 %v1157
  %1762 = vmatprep.subr.mxu0 0.0
  %1763 = vmatpush1.msra.mxu0 %v1158
  %1764 = vmatprep.subr.mxu0 0.0
  %1765 = vmatpush1.msra.mxu0 0.0
  %1766 = vmatprep.subr.mxu0 0.0
  %1767 = vmatpush1.msra.mxu0 0.0
  %1768 = vmatprep.subr.mxu0 0.0
  %1769 = vmatpush1.msra.mxu0 0.0
  %1770 = vmatprep.subr.mxu0 0.0
  %1771 = vmatpush1.msra.mxu0 0.0
  %1772 = vmatprep.subr.mxu0 0.0
  %1773 = vmatpush1.msra.mxu0 0.0
  %1774 = vmatprep.subr.mxu0 0.0
  %1775 = vmatpush1.msra.mxu0 0.0
  %1776 = vmatprep.subr.mxu0 0.0
  %1777 = vmatpush1.msra.mxu0 0.0
  %1778 = vmatprep.subr.mxu0 0.0
  %1779 = vmatpush1.msra.mxu0 0.0
  %1780 = vmatprep.subr.mxu0 0.0
  %1781 = vmatpush1.msra.mxu0 0.0
  %1782 = vmatprep.subr.mxu0 0.0
  %1783 = vmatpush1.msra.mxu0 0.0
  %1784 = vmatprep.subr.mxu0 0.0
  %1785 = vmatpush1.msra.mxu0 0.0
  %1786 = vmatprep.subr.mxu0 0.0
  %1787 = vmatpush1.msra.mxu0 0.0
  %1788 = vmatprep.subr.mxu0 0.0
  %1789 = vmatpush1.msra.mxu0 0.0
  %1790 = vmatprep.subr.mxu0 0.0
  %1791 = vmatpush1.msra.mxu0 0.0
  %1792 = vmatprep.subr.mxu0 0.0
  %1793 = vmatpush1.msra.mxu0 0.0
  %1794 = vmatprep.subr.mxu0 0.0
  %1795 = vmatpush1.msra.mxu0 0.0
  %1796 = vmatprep.subr.mxu0 0.0
  %1797 = vmatpush1.msra.mxu0 0.0
  %1798 = vmatprep.subr.mxu0 0.0
  %1799 = vmatpush1.msra.mxu0 0.0
  %1800 = vmatprep.subr.mxu0 0.0
  %1801 = vmatpush1.msra.mxu0 0.0
  %1802 = vmatprep.subr.mxu0 0.0
  %1803 = vmatpush1.msra.mxu0 0.0
  %1804 = vmatprep.subr.mxu0 0.0
  %1805 = vmatpush1.msra.mxu0 0.0
  %1806 = vmatprep.subr.mxu0 0.0
  %1807 = vmatpush1.msra.mxu0 0.0
  %1808 = vmatprep.subr.mxu0 0.0
  %1809 = vmatpush1.msra.mxu0 0.0
  %1810 = vmatprep.subr.mxu0 0.0
  %1811 = vmatpush1.msra.mxu0 0.0
  %1812 = vmatprep.subr.mxu0 0.0
  %1813 = vmatpush1.msra.mxu0 0.0
  %1814 = vmatprep.subr.mxu0 0.0
  %1815 = vmatpush1.msra.mxu0 0.0
  %1816 = vmatprep.subr.mxu0 0.0
  %1817 = vmatpush1.msra.mxu0 0.0
  %1818 = vmatprep.subr.mxu0 0.0
  %1819 = vmatpush1.msra.mxu0 0.0
  %1820 = vmatprep.mubr.f32.mxu0 0.0
  %1821 = vmatmul.mubr.f32.gmra.mrb[0].mxu0 %v1754
  %v1822 = vpop.f32.mrb[0].mxu0
  %v1823 = vadd.f32 0.0, %v1822
  %v1824 = vpop.f32.mrb[0].mxu0
  %1825 = vdwg.mxu0
  %v1826 = vadd.f32 %v1151, %v1823
  %v1827 = vsub.f32 0.0, %v1826
  %v1828 = vmul.f32 %v1827, 1.442695
  %v1829 = vpow.pop %v1828
  %v1830 = vadd.f32 %v1829, 1.0
  %v1831 = vrcp.pop %v1830
  %v1832 = vtanh.pop %v1826
  %v1833 = vmul.f32 %v1831, %v1744
  %1835 = vrot.lane.b32.xlu0 %v1832, 64
  %v1836 = vpop.permute.xlu0 %1835
  %v1838 = vmul.f32 %v1831, %v1836
  %1840 = vrot.lane.b32.xlu0 %v1838, 32
  %v1841 = vpop.permute.xlu0 %1840
  %v1843 = vadd.f32 %v1833, %v1841
  %v1844 = vtanh.pop %v1843
  %1846 = vrot.lane.b32.xlu0 %v1844, 64
  %v1847 = vpop.permute.xlu0 %1846
  %v1849 = vmul.f32 %v1831, %v1847
  %1851 = vrot.lane.b32.xlu0 %v1849, 32
  %v1852 = vpop.permute.xlu0 %1851
  %v1853 = vsel %vm867, %v1852, 0
  %1855 = vmatprep.subr.mxu0 0.0
  %1856 = vmatpush1.msra.mxu0 %v1155
  %1857 = vmatprep.subr.mxu0 0.0
  %1858 = vmatpush1.msra.mxu0 %v1156
  %1859 = vmatprep.subr.mxu0 0.0
  %1860 = vmatpush1.msra.mxu0 %v1157
  %1861 = vmatprep.subr.mxu0 0.0
  %1862 = vmatpush1.msra.mxu0 %v1158
  %1863 = vmatprep.subr.mxu0 0.0
  %1864 = vmatpush1.msra.mxu0 0.0
  %1865 = vmatprep.subr.mxu0 0.0
  %1866 = vmatpush1.msra.mxu0 0.0
  %1867 = vmatprep.subr.mxu0 0.0
  %1868 = vmatpush1.msra.mxu0 0.0
  %1869 = vmatprep.subr.mxu0 0.0
  %1870 = vmatpush1.msra.mxu0 0.0
  %1871 = vmatprep.subr.mxu0 0.0
  %1872 = vmatpush1.msra.mxu0 0.0
  %1873 = vmatprep.subr.mxu0 0.0
  %1874 = vmatpush1.msra.mxu0 0.0
  %1875 = vmatprep.subr.mxu0 0.0
  %1876 = vmatpush1.msra.mxu0 0.0
  %1877 = vmatprep.subr.mxu0 0.0
  %1878 = vmatpush1.msra.mxu0 0.0
  %1879 = vmatprep.subr.mxu0 0.0
  %1880 = vmatpush1.msra.mxu0 0.0
  %1881 = vmatprep.subr.mxu0 0.0
  %1882 = vmatpush1.msra.mxu0 0.0
  %1883 = vmatprep.subr.mxu0 0.0
  %1884 = vmatpush1.msra.mxu0 0.0
  %1885 = vmatprep.subr.mxu0 0.0
  %1886 = vmatpush1.msra.mxu0 0.0
  %1887 = vmatprep.subr.mxu0 0.0
  %1888 = vmatpush1.msra.mxu0 0.0
  %1889 = vmatprep.subr.mxu0 0.0
  %1890 = vmatpush1.msra.mxu0 0.0
  %1891 = vmatprep.subr.mxu0 0.0
  %1892 = vmatpush1.msra.mxu0 0.0
  %1893 = vmatprep.subr.mxu0 0.0
  %1894 = vmatpush1.msra.mxu0 0.0
  %1895 = vmatprep.subr.mxu0 0.0
  %1896 = vmatpush1.msra.mxu0 0.0
  %1897 = vmatprep.subr.mxu0 0.0
  %1898 = vmatpush1.msra.mxu0 0.0
  %1899 = vmatprep.subr.mxu0 0.0
  %1900 = vmatpush1.msra.mxu0 0.0
  %1901 = vmatprep.subr.mxu0 0.0
  %1902 = vmatpush1.msra.mxu0 0.0
  %1903 = vmatprep.subr.mxu0 0.0
  %1904 = vmatpush1.msra.mxu0 0.0
  %1905 = vmatprep.subr.mxu0 0.0
  %1906 = vmatpush1.msra.mxu0 0.0
  %1907 = vmatprep.subr.mxu0 0.0
  %1908 = vmatpush1.msra.mxu0 0.0
  %1909 = vmatprep.subr.mxu0 0.0
  %1910 = vmatpush1.msra.mxu0 0.0
  %1911 = vmatprep.subr.mxu0 0.0
  %1912 = vmatpush1.msra.mxu0 0.0
  %1913 = vmatprep.subr.mxu0 0.0
  %1914 = vmatpush1.msra.mxu0 0.0
  %1915 = vmatprep.subr.mxu0 0.0
  %1916 = vmatpush1.msra.mxu0 0.0
  %1917 = vmatprep.subr.mxu0 0.0
  %1918 = vmatpush1.msra.mxu0 0.0
  %1919 = vmatprep.mubr.f32.mxu0 0.0
  %1920 = vmatmul.mubr.f32.gmra.mrb[0].mxu0 %v1853
  %v1921 = vpop.f32.mrb[0].mxu0
  %v1922 = vadd.f32 0.0, %v1921
  %v1923 = vpop.f32.mrb[0].mxu0
  %1924 = vdwg.mxu0
  %v1925 = vadd.f32 %v1153, %v1922
  %v1926 = vsub.f32 0.0, %v1925
  %v1927 = vmul.f32 %v1926, 1.442695
  %v1928 = vpow.pop %v1927
  %v1929 = vadd.f32 %v1928, 1.0
  %v1930 = vrcp.pop %v1929
  %v1931 = vtanh.pop %v1925
  %v1932 = vmul.f32 %v1930, %v1843
  %1934 = vrot.lane.b32.xlu0 %v1931, 64
  %v1935 = vpop.permute.xlu0 %1934
  %v1937 = vmul.f32 %v1930, %v1935
  %1939 = vrot.lane.b32.xlu0 %v1937, 32
  %v1940 = vpop.permute.xlu0 %1939
  %v1942 = vadd.f32 %v1932, %v1940
  %v1943 = vtanh.pop %v1942
  %1945 = vrot.lane.b32.xlu0 %v1943, 64
  %v1946 = vpop.permute.xlu0 %1945
  %v1948 = vmul.f32 %v1930, %v1946
  %v1949 = vld [vmem:[%s8] sm:$0xff]
  %v1950 = vld [vmem:[%s8 + $0x8] sm:$0xff]
  %v1951 = vld [vmem:[%s8 + $0x10] sm:$0xff]
  %v1952 = vld [vmem:[%s8 + $0x18] sm:$0xff]
  %v1953 = vld [vmem:[%s9] sm:$0x1]
  %v1955 = vlaneseq
  %v1956 = vshrl.u32 %v1955, 7
  %v1957 = vsub.s32 0, %v1956
  %v1958 = vrot.slane %v1953, %v1957
  %1961 = vrot.lane.b32.xlu0 %v1948, 32
  %v1962 = vpop.permute.xlu0 %1961
  %v1963 = vsel %vm867, %v1962, 0
  %1965 = vmatprep.subr.mxu0 0.0
  %1966 = vmatpush1.msra.mxu0 %v1949
  %1967 = vmatprep.subr.mxu0 0.0
  %1968 = vmatpush1.msra.mxu0 %v1950
  %1969 = vmatprep.subr.mxu0 0.0
  %1970 = vmatpush1.msra.mxu0 %v1951
  %1971 = vmatprep.subr.mxu0 0.0
  %1972 = vmatpush1.msra.mxu0 %v1952
  %1973 = vmatprep.subr.mxu0 0.0
  %1974 = vmatpush1.msra.mxu0 0.0
  %1975 = vmatprep.subr.mxu0 0.0
  %1976 = vmatpush1.msra.mxu0 0.0
  %1977 = vmatprep.subr.mxu0 0.0
  %1978 = vmatpush1.msra.mxu0 0.0
  %1979 = vmatprep.subr.mxu0 0.0
  %1980 = vmatpush1.msra.mxu0 0.0
  %1981 = vmatprep.subr.mxu0 0.0
  %1982 = vmatpush1.msra.mxu0 0.0
  %1983 = vmatprep.subr.mxu0 0.0
  %1984 = vmatpush1.msra.mxu0 0.0
  %1985 = vmatprep.subr.mxu0 0.0
  %1986 = vmatpush1.msra.mxu0 0.0
  %1987 = vmatprep.subr.mxu0 0.0
  %1988 = vmatpush1.msra.mxu0 0.0
  %1989 = vmatprep.subr.mxu0 0.0
  %1990 = vmatpush1.msra.mxu0 0.0
  %1991 = vmatprep.subr.mxu0 0.0
  %1992 = vmatpush1.msra.mxu0 0.0
  %1993 = vmatprep.subr.mxu0 0.0
  %1994 = vmatpush1.msra.mxu0 0.0
  %1995 = vmatprep.subr.mxu0 0.0
  %1996 = vmatpush1.msra.mxu0 0.0
  %1997 = vmatprep.subr.mxu0 0.0
  %1998 = vmatpush1.msra.mxu0 0.0
  %1999 = vmatprep.subr.mxu0 0.0
  %2000 = vmatpush1.msra.mxu0 0.0
  %2001 = vmatprep.subr.mxu0 0.0
  %2002 = vmatpush1.msra.mxu0 0.0
  %2003 = vmatprep.subr.mxu0 0.0
  %2004 = vmatpush1.msra.mxu0 0.0
  %2005 = vmatprep.subr.mxu0 0.0
  %2006 = vmatpush1.msra.mxu0 0.0
  %2007 = vmatprep.subr.mxu0 0.0
  %2008 = vmatpush1.msra.mxu0 0.0
  %2009 = vmatprep.subr.mxu0 0.0
  %2010 = vmatpush1.msra.mxu0 0.0
  %2011 = vmatprep.subr.mxu0 0.0
  %2012 = vmatpush1.msra.mxu0 0.0
  %2013 = vmatprep.subr.mxu0 0.0
  %2014 = vmatpush1.msra.mxu0 0.0
  %2015 = vmatprep.subr.mxu0 0.0
  %2016 = vmatpush1.msra.mxu0 0.0
  %2017 = vmatprep.subr.mxu0 0.0
  %2018 = vmatpush1.msra.mxu0 0.0
  %2019 = vmatprep.subr.mxu0 0.0
  %2020 = vmatpush1.msra.mxu0 0.0
  %2021 = vmatprep.subr.mxu0 0.0
  %2022 = vmatpush1.msra.mxu0 0.0
  %2023 = vmatprep.subr.mxu0 0.0
  %2024 = vmatpush1.msra.mxu0 0.0
  %2025 = vmatprep.subr.mxu0 0.0
  %2026 = vmatpush1.msra.mxu0 0.0
  %2027 = vmatprep.subr.mxu0 0.0
  %2028 = vmatpush1.msra.mxu0 0.0
  %2029 = vmatprep.mubr.f32.mxu0 0.0
  %2030 = vmatmul.mubr.f32.gmra.mrb[0].mxu0 %v1963
  %v2031 = vpop.f32.mrb[0].mxu0
  %v2032 = vadd.f32 %v1958, %v2031
  %v2033 = vpop.f32.mrb[0].mxu0
  %2034 = vdwg.mxu0
  %2035 = vst [vmem:[%s10] sm:$0xff] %v2032
  // Predicated region
  $region42: #{cnn_lstm_forward.1} parent=0 // pred_check
    _
  $region43: #{cnn_lstm_forward.1} parent=0 // pred_check_branch
    %2037 = sbr.rel (0) target = $region45
  $region44: #{cnn_lstm_forward.1} parent=0 // pred_region
    _
  $region45: #{cnn_lstm_forward.1} parent=0 // pred_fallthru
    _
  // Predicated region
  $region46: #{cnn_lstm_forward.1} parent=0 // pred_check
    _
  $region47: #{cnn_lstm_forward.1} parent=0 // pred_check_branch
    %2039 = sbr.rel (0) target = $region49
  $region48: #{cnn_lstm_forward.1} parent=0 // pred_region
    _
  $region49: #{cnn_lstm_forward.1} parent=0 // pred_fallthru
    _

</llo_original>
